<compile_context>
chip_gen: v7x
topology: tpu7x:2x2x1
jax: 0.10.0
libtpu: 0.0.40
codegen_flags: <defaults>
</compile_context>

<pallas_src>
import jax
import jax.numpy as jnp
from jax.experimental import pallas as pl
from jax.experimental.pallas import tpu as pltpu

N_EMBD = 128                     # module hardcodes n_embd = 128
N_HEAD = 8                       # module hardcodes n_head = 8
HEAD_SIZE = N_EMBD // N_HEAD     # 16
LN_EPS = 1e-5                    # PyTorch LayerNorm default


def _layernorm_f32(x, g, b):
    mu = jnp.mean(x, axis=-1, keepdims=True)
    xc = x - mu
    var = jnp.mean(xc * xc, axis=-1, keepdims=True)
    return xc * jax.lax.rsqrt(var + LN_EPS) * g + b


def block_kernel(x_ref, g1_ref, b1_ref, wqkv_ref, wp_ref, bp_ref,
                 g2_ref, b2_ref, w1_ref, bf1_ref, w2_ref, bf2_ref,
                 o_ref, h1_ref, sa_ref):
    BB, T, C = x_ref.shape
    R = BB * T
    D = HEAD_SIZE

    # ---------------- LayerNorm 1 (f32 VPU math) ----------------
    h1 = _layernorm_f32(x_ref[...].reshape(R, C), g1_ref[...], b1_ref[...])
    h1_ref[...] = h1.astype(jnp.bfloat16)          # MXU operand, kept in VMEM scratch
    sa_ref[...] = jnp.zeros_like(sa_ref)           # attention-output accumulator (f32)

    # ---------------- Multi-head self-attention (no causal mask) ----------------
    # Head index lives on the *leading* dim of the pre-split weights, so each
    # iteration only does dynamic-base ref loads + static 16-wide value slices.
    @pl.loop(0, N_HEAD)
    def _head(h):
        w_h = wqkv_ref[h]                           # (C, 3D) bf16: [q|k|v] cols, scale folded in q
        qkv_h = jnp.dot(h1_ref[...], w_h,
                        preferred_element_type=jnp.float32)          # (R, 3D) f32
        q_h = qkv_h[:, 0 * D:1 * D].astype(jnp.bfloat16)
        k_h = qkv_h[:, 1 * D:2 * D].astype(jnp.bfloat16)
        v_h = qkv_h[:, 2 * D:3 * D].astype(jnp.bfloat16)
        wp_h = wp_ref[h]                            # (D, C) bf16: out-proj rows for this head

        for bb in range(BB):                        # static: independent sequences per step
            r0 = bb * T
            q_b = q_h[r0:r0 + T]
            k_b = k_h[r0:r0 + T]
            v_b = v_h[r0:r0 + T]
            # scores: contract the head dim of q and k directly (no materialized k.T)
            s = jax.lax.dot_general(q_b, k_b, (((1,), (1,)), ((), ())),
                                    preferred_element_type=jnp.float32)   # (T, T) f32
            # numerically-stable softmax over keys (f32; exact normalization)
            s_max = jnp.max(s, axis=-1, keepdims=True)
            p = jnp.exp(s - s_max)
            denom = jnp.sum(p, axis=-1, keepdims=True)
            p = p * pl.reciprocal(denom, approx=False)
            o_b = jnp.dot(p.astype(jnp.bfloat16), v_b,
                          preferred_element_type=jnp.float32)             # (T, D)
            # fused head-concat + output projection (wide N=128 matmul)
            sa_ref[r0:r0 + T, :] += jnp.dot(o_b.astype(jnp.bfloat16), wp_h,
                                            preferred_element_type=jnp.float32)

    x = x_ref[...].reshape(R, C)                    # reload residual (not live across the loop)
    x2 = x + sa_ref[...] + bp_ref[...]

    # ---------------- LayerNorm 2 + FeedForward ----------------
    h2 = _layernorm_f32(x2, g2_ref[...], b2_ref[...])
    f = jnp.dot(h2.astype(jnp.bfloat16), w1_ref[...],
                preferred_element_type=jnp.float32) + bf1_ref[...]
    f = jnp.maximum(f, 0.0)
    f = jnp.dot(f.astype(jnp.bfloat16), w2_ref[...],
                preferred_element_type=jnp.float32) + bf2_ref[...]

    o_ref[...] = (x2 + f).reshape(BB, T, C).astype(o_ref.dtype)


def prepare_block_params(g1, b1, wq, wk, wv, wp, bp, g2, b2, w1, bf1, w2, bf2):
    """One-time parameter packing (hoisted out of the per-forward path).

    Projection weights are (in, out) == PyTorch weight.T.  Head h occupies
    output columns [h*D, (h+1)*D) of Q/K/V and rows [h*D, (h+1)*D) of the
    output projection — the same ordering as torch.cat over heads.
    """
    C, D, H = N_EMBD, HEAD_SIZE, N_HEAD
    scale = D ** (-0.5)

    def per_head_cols(w):                           # (C, C) -> (H, C, D)
        return w.reshape(C, H, D).transpose(1, 0, 2)

    # Per-head fused [q|k|v] weights, softmax scale folded into Wq; bf16 MXU operands.
    wqkv = jnp.concatenate(
        [per_head_cols(wq * scale), per_head_cols(wk), per_head_cols(wv)],
        axis=-1).astype(jnp.bfloat16)               # (H, C, 3D)
    wp_h = wp.reshape(H, D, C).astype(jnp.bfloat16)  # (H, D, C)

    f32 = jnp.float32
    return (
        g1.reshape(1, C).astype(f32), b1.reshape(1, C).astype(f32),
        wqkv, wp_h, bp.reshape(1, C).astype(f32),
        g2.reshape(1, C).astype(f32), b2.reshape(1, C).astype(f32),
        w1.astype(jnp.bfloat16), bf1.reshape(1, 4 * C).astype(f32),
        w2.astype(jnp.bfloat16), bf2.reshape(1, C).astype(f32),
    )


def _rows_per_step(B, T, row_cap):
    """Largest divisor BB of B with BB*T <= row_cap: amortizes grid-step overhead
    and fills the MXU M dimension when T is small; BB=1 for long sequences."""
    best = 1
    for cand in range(1, B + 1):
        if B % cand == 0 and cand * T <= row_cap:
            best = cand
    return best


def block_forward(x, params, *, row_cap=256):
    """x: (B, T, C) with C == n_embd == 128; params from prepare_block_params."""
    B, T, C = x.shape
    assert C == N_EMBD
    BB = _rows_per_step(B, T, row_cap)
    R = BB * T

    def _full(shape):
        nd = len(shape)
        return pl.BlockSpec(shape, lambda b, nd=nd: (0,) * nd)

    param_specs = [_full(p.shape) for p in params]

    return pl.pallas_call(
        block_kernel,
        out_shape=jax.ShapeDtypeStruct((B, T, C), x.dtype),
        grid_spec=pltpu.PrefetchScalarGridSpec(
            num_scalar_prefetch=0,
            grid=(B // BB,),
            in_specs=[pl.BlockSpec((BB, T, C), lambda b: (b, 0, 0))] + param_specs,
            out_specs=pl.BlockSpec((BB, T, C), lambda b: (b, 0, 0)),
            scratch_shapes=[
                pltpu.VMEM((R, C), jnp.bfloat16),   # h1 (bf16 MXU operand, reused per head)
                pltpu.VMEM((R, C), jnp.float32),    # attention-output accumulator
            ],
        ),
        compiler_params=pltpu.CompilerParams(
            dimension_semantics=("parallel",),
            vmem_limit_bytes=32 * 1024 * 1024,      # explicit; footprint here is ~1 MiB
        ),
    )(x, *params)


def reference(x, g1, b1, wq, wk, wv, wp, bp, g2, b2, w1, bf1, w2, bf2):
    """Pure-JAX f32 replica of Block.forward (eval mode, no mask — matches the spec)."""
    def ln(z, g, b):
        mu = jnp.mean(z, axis=-1, keepdims=True)
        var = jnp.mean((z - mu) ** 2, axis=-1, keepdims=True)
        return (z - mu) / jnp.sqrt(var + LN_EPS) * g + b

    B, T, C = x.shape
    h1 = ln(x, g1, b1)
    q, k, v = h1 @ wq, h1 @ wk, h1 @ wv
    qh = q.reshape(B, T, N_HEAD, HEAD_SIZE)
    kh = k.reshape(B, T, N_HEAD, HEAD_SIZE)
    vh = v.reshape(B, T, N_HEAD, HEAD_SIZE)
    s = jnp.einsum('bthd,bshd->bhts', qh, kh) * (HEAD_SIZE ** -0.5)
    p = jax.nn.softmax(s, axis=-1)
    o = jnp.einsum('bhts,bshd->bthd', p, vh).reshape(B, T, C)
    x2 = x + (o @ wp + bp)
    h2 = ln(x2, g2, b2)
    f = jnp.maximum(h2 @ w1 + bf1, 0.0) @ w2 + bf2
    return x2 + f


if __name__ == "__main__":
    key = jax.random.PRNGKey(0)
    keys = jax.random.split(key, 14)

    B, T, C = 2, 8, N_EMBD
    x = jax.random.normal(keys[0], (B, T, C), dtype=jnp.float32)

    def lin(k, fan_in, shape):
        return jax.random.normal(k, shape, dtype=jnp.float32) / jnp.sqrt(fan_in)

    # Projection weights stored as (in, out) == PyTorch weight.T; head h occupies
    # output columns [h*16, (h+1)*16) — same ordering as torch.cat of the heads.
    wq = lin(keys[1], C, (C, C))
    wk = lin(keys[2], C, (C, C))
    wv = lin(keys[3], C, (C, C))
    wp = lin(keys[4], C, (C, C))
    bp = 0.1 * jax.random.normal(keys[5], (C,), dtype=jnp.float32)
    w1 = lin(keys[6], C, (C, 4 * C))
    bf1 = 0.1 * jax.random.normal(keys[7], (4 * C,), dtype=jnp.float32)
    w2 = lin(keys[8], 4 * C, (4 * C, C))
    bf2 = 0.1 * jax.random.normal(keys[9], (C,), dtype=jnp.float32)
    g1 = 1.0 + 0.1 * jax.random.normal(keys[10], (C,), dtype=jnp.float32)
    b1 = 0.1 * jax.random.normal(keys[11], (C,), dtype=jnp.float32)
    g2 = 1.0 + 0.1 * jax.random.normal(keys[12], (C,), dtype=jnp.float32)
    b2 = 0.1 * jax.random.normal(keys[13], (C,), dtype=jnp.float32)

    # One-time parameter prep (bf16 weight packing, per-head layouts, bias reshapes).
    params = prepare_block_params(g1, b1, wq, wk, wv, wp, bp, g2, b2,
                                  w1, bf1, w2, bf2)

    out = block_forward(x, params)
    out = jax.block_until_ready(out)

    ref = reference(x, g1, b1, wq, wk, wv, wp, bp, g2, b2, w1, bf1, w2, bf2)
    assert out.shape == (B, T, C)
    # bf16 MXU operands with f32 accumulation: slightly looser tolerance than pure f32.
    assert jnp.allclose(out, ref, atol=5e-2, rtol=5e-2), "mismatch vs reference"

    print("KERNEL_OK")
</pallas_src>

<mosaic_0001>
module attributes {stable_mosaic.version = 11 : i64} {
  func.func @block_kernel(%arg0: i32, %arg1: memref<2x8x128xf32, #tpu.memory_space<vmem>>, %arg2: memref<1x128xf32, #tpu.memory_space<vmem>>, %arg3: memref<1x128xf32, #tpu.memory_space<vmem>>, %arg4: memref<8x128x48xbf16, #tpu.memory_space<vmem>>, %arg5: memref<8x16x128xbf16, #tpu.memory_space<vmem>>, %arg6: memref<1x128xf32, #tpu.memory_space<vmem>>, %arg7: memref<1x128xf32, #tpu.memory_space<vmem>>, %arg8: memref<1x128xf32, #tpu.memory_space<vmem>>, %arg9: memref<128x512xbf16, #tpu.memory_space<vmem>>, %arg10: memref<1x512xf32, #tpu.memory_space<vmem>>, %arg11: memref<512x128xbf16, #tpu.memory_space<vmem>>, %arg12: memref<1x128xf32, #tpu.memory_space<vmem>>, %arg13: memref<2x8x128xf32, #tpu.memory_space<vmem>>, %arg14: memref<16x128xbf16, #tpu.memory_space<vmem>>, %arg15: memref<16x128xf32, #tpu.memory_space<vmem>>) attributes {dimension_semantics = [#tpu.dimension_semantics<parallel>], iteration_bounds = array<i64: 1>, scalar_prefetch = 0 : i64, scratch_operands = 2 : i64, tpu.core_type = #tpu.core_type<tc>, window_params = [{transform_indices = @transform_0, window_bounds = array<i64: 2, 8, 128>}, {pipeline_mode = #tpu.pipeline_mode<synchronous>, transform_indices = @transform_1, window_bounds = array<i64: 1, 128>}, {pipeline_mode = #tpu.pipeline_mode<synchronous>, transform_indices = @transform_2, window_bounds = array<i64: 1, 128>}, {pipeline_mode = #tpu.pipeline_mode<synchronous>, transform_indices = @transform_3, window_bounds = array<i64: 8, 128, 48>}, {pipeline_mode = #tpu.pipeline_mode<synchronous>, transform_indices = @transform_4, window_bounds = array<i64: 8, 16, 128>}, {pipeline_mode = #tpu.pipeline_mode<synchronous>, transform_indices = @transform_5, window_bounds = array<i64: 1, 128>}, {pipeline_mode = #tpu.pipeline_mode<synchronous>, transform_indices = @transform_6, window_bounds = array<i64: 1, 128>}, {pipeline_mode = #tpu.pipeline_mode<synchronous>, transform_indices = @transform_7, window_bounds = array<i64: 1, 128>}, {pipeline_mode = #tpu.pipeline_mode<synchronous>, transform_indices = @transform_8, window_bounds = array<i64: 128, 512>}, {pipeline_mode = #tpu.pipeline_mode<synchronous>, transform_indices = @transform_9, window_bounds = array<i64: 1, 512>}, {pipeline_mode = #tpu.pipeline_mode<synchronous>, transform_indices = @transform_10, window_bounds = array<i64: 512, 128>}, {pipeline_mode = #tpu.pipeline_mode<synchronous>, transform_indices = @transform_11, window_bounds = array<i64: 1, 128>}, {transform_indices = @transform_12, window_bounds = array<i64: 2, 8, 128>}]} {
    %c0 = arith.constant 0 : index
    %c0_0 = arith.constant 0 : index
    %c0_1 = arith.constant 0 : index
    %0 = vector.load %arg1[%c0, %c0_0, %c0_1] : memref<2x8x128xf32, #tpu.memory_space<vmem>>, vector<2x8x128xf32>
    %1 = vector.shape_cast %0 : vector<2x8x128xf32> to vector<16x128xf32>
    %c0_2 = arith.constant 0 : index
    %c0_3 = arith.constant 0 : index
    %2 = vector.load %arg2[%c0_2, %c0_3] : memref<1x128xf32, #tpu.memory_space<vmem>>, vector<1x128xf32>
    %c0_4 = arith.constant 0 : index
    %c0_5 = arith.constant 0 : index
    %3 = vector.load %arg3[%c0_4, %c0_5] : memref<1x128xf32, #tpu.memory_space<vmem>>, vector<1x128xf32>
    %cst = arith.constant dense<0.000000e+00> : vector<16xf32>
    %4 = vector.multi_reduction <add>, %1, %cst [1] : vector<16x128xf32> to vector<16xf32>
    %5 = vector.shape_cast %4 : vector<16xf32> to vector<16x1xf32>
    %cst_6 = arith.constant 1.280000e+02 : f32
    %6 = vector.broadcast %cst_6 : f32 to vector<16x1xf32>
    %7 = arith.divf %5, %6 : vector<16x1xf32>
    %8 = vector.broadcast %7 : vector<16x1xf32> to vector<16x128xf32>
    %9 = arith.subf %1, %8 : vector<16x128xf32>
    %10 = arith.mulf %9, %9 : vector<16x128xf32>
    %cst_7 = arith.constant dense<0.000000e+00> : vector<16xf32>
    %11 = vector.multi_reduction <add>, %10, %cst_7 [1] : vector<16x128xf32> to vector<16xf32>
    %12 = vector.shape_cast %11 : vector<16xf32> to vector<16x1xf32>
    %cst_8 = arith.constant 1.280000e+02 : f32
    %13 = vector.broadcast %cst_8 : f32 to vector<16x1xf32>
    %14 = arith.divf %12, %13 : vector<16x1xf32>
    %cst_9 = arith.constant 9.99999974E-6 : f32
    %15 = vector.broadcast %cst_9 : f32 to vector<16x1xf32>
    %16 = arith.addf %14, %15 : vector<16x1xf32>
    %17 = math.rsqrt %16 : vector<16x1xf32>
    %18 = vector.broadcast %17 : vector<16x1xf32> to vector<16x128xf32>
    %19 = arith.mulf %9, %18 : vector<16x128xf32>
    %20 = vector.broadcast %2 : vector<1x128xf32> to vector<16x128xf32>
    %21 = arith.mulf %19, %20 : vector<16x128xf32>
    %22 = vector.broadcast %3 : vector<1x128xf32> to vector<16x128xf32>
    %23 = arith.addf %21, %22 : vector<16x128xf32>
    %24 = arith.truncf %23 : vector<16x128xf32> to vector<16x128xbf16>
    %c0_10 = arith.constant 0 : index
    %c0_11 = arith.constant 0 : index
    %25 = vector.load %arg14[%c0_10, %c0_11] : memref<16x128xbf16, #tpu.memory_space<vmem>>, vector<16x128xbf16>
    tpu.vector_store %arg14[%c0_10, %c0_11], %24 {strides = array<i32>} : memref<16x128xbf16, #tpu.memory_space<vmem>>, vector<16x128xbf16>,
    %cst_12 = arith.constant 0.000000e+00 : f32
    %26 = vector.broadcast %cst_12 : f32 to vector<16x128xf32>
    %c0_13 = arith.constant 0 : index
    %c0_14 = arith.constant 0 : index
    %27 = vector.load %arg15[%c0_13, %c0_14] : memref<16x128xf32, #tpu.memory_space<vmem>>, vector<16x128xf32>
    tpu.vector_store %arg15[%c0_13, %c0_14], %26 {strides = array<i32>} : memref<16x128xf32, #tpu.memory_space<vmem>>, vector<16x128xf32>,
    %c0_i32 = arith.constant 0 : i32
    %c8_i32 = arith.constant 8 : i32
    %28 = arith.addi %c0_i32, %c8_i32 : i32
    %c1_i32 = arith.constant 1 : i32
    scf.for %arg16 = %c0_i32 to %28 step %c1_i32  : i32 {
      %c1_i32_46 = arith.constant 1 : i32
      %75 = arith.muli %arg16, %c1_i32_46 : i32
      %c0_i32_47 = arith.constant 0 : i32
      %76 = arith.addi %c0_i32_47, %75 : i32
      %77 = arith.index_cast %76 : i32 to index
      %c0_48 = arith.constant 0 : index
      %c0_49 = arith.constant 0 : index
      %78 = vector.load %arg4[%77, %c0_48, %c0_49] : memref<8x128x48xbf16, #tpu.memory_space<vmem>>, vector<1x128x48xbf16>
      %79 = vector.shape_cast %78 : vector<1x128x48xbf16> to vector<128x48xbf16>
      %c0_50 = arith.constant 0 : index
      %c0_51 = arith.constant 0 : index
      %80 = vector.load %arg14[%c0_50, %c0_51] : memref<16x128xbf16, #tpu.memory_space<vmem>>, vector<16x128xbf16>
      %cst_52 = arith.constant dense<0.000000e+00> : vector<16x48xf32>
      %81 = tpu.matmul %80, %79, %cst_52 {dimension_numbers = #tpu.dot_dimension_numbers<[1], [0], [0], [1], [0, 0, 1, 1], [], []>} : vector<16x128xbf16>, vector<128x48xbf16>, vector<16x48xf32> -> vector<16x48xf32>
      %82 = vector.extract_strided_slice %81 {offsets = [0, 0], sizes = [16, 16], strides = [1, 1]} : vector<16x48xf32> to vector<16x16xf32>
      %83 = arith.truncf %82 : vector<16x16xf32> to vector<16x16xbf16>
      %84 = vector.extract_strided_slice %81 {offsets = [0, 16], sizes = [16, 16], strides = [1, 1]} : vector<16x48xf32> to vector<16x16xf32>
      %85 = arith.truncf %84 : vector<16x16xf32> to vector<16x16xbf16>
      %86 = vector.extract_strided_slice %81 {offsets = [0, 32], sizes = [16, 16], strides = [1, 1]} : vector<16x48xf32> to vector<16x16xf32>
      %87 = arith.truncf %86 : vector<16x16xf32> to vector<16x16xbf16>
      %88 = arith.index_cast %76 : i32 to index
      %c0_53 = arith.constant 0 : index
      %c0_54 = arith.constant 0 : index
      %89 = vector.load %arg5[%88, %c0_53, %c0_54] : memref<8x16x128xbf16, #tpu.memory_space<vmem>>, vector<1x16x128xbf16>
      %90 = vector.shape_cast %89 : vector<1x16x128xbf16> to vector<16x128xbf16>
      %91 = vector.extract_strided_slice %83 {offsets = [0, 0], sizes = [8, 16], strides = [1, 1]} : vector<16x16xbf16> to vector<8x16xbf16>
      %92 = vector.extract_strided_slice %85 {offsets = [0, 0], sizes = [8, 16], strides = [1, 1]} : vector<16x16xbf16> to vector<8x16xbf16>
      %93 = vector.extract_strided_slice %87 {offsets = [0, 0], sizes = [8, 16], strides = [1, 1]} : vector<16x16xbf16> to vector<8x16xbf16>
      %cst_55 = arith.constant dense<0.000000e+00> : vector<8x8xf32>
      %94 = tpu.matmul %91, %92, %cst_55 {dimension_numbers = #tpu.dot_dimension_numbers<[1], [1], [0], [0], [0, 0, 1, 0], [], []>} : vector<8x16xbf16>, vector<8x16xbf16>, vector<8x8xf32> -> vector<8x8xf32>
      %cst_56 = arith.constant dense<0xFF800000> : vector<8xf32>
      %95 = vector.multi_reduction <maximumf>, %94, %cst_56 [1] : vector<8x8xf32> to vector<8xf32>
      %96 = vector.shape_cast %95 : vector<8xf32> to vector<8x1xf32>
      %97 = vector.broadcast %96 : vector<8x1xf32> to vector<8x8xf32>
      %98 = arith.subf %94, %97 : vector<8x8xf32>
      %99 = math.exp %98 : vector<8x8xf32>
      %cst_57 = arith.constant dense<0.000000e+00> : vector<8xf32>
      %100 = vector.multi_reduction <add>, %99, %cst_57 [1] : vector<8x8xf32> to vector<8xf32>
      %101 = vector.shape_cast %100 : vector<8xf32> to vector<8x1xf32>
      %102 = tpu.reciprocal %101 : vector<8x1xf32> -> vector<8x1xf32>
      %103 = vector.broadcast %102 : vector<8x1xf32> to vector<8x8xf32>
      %104 = arith.mulf %99, %103 : vector<8x8xf32>
      %105 = arith.truncf %104 : vector<8x8xf32> to vector<8x8xbf16>
      %cst_58 = arith.constant dense<0.000000e+00> : vector<8x16xf32>
      %106 = tpu.matmul %105, %93, %cst_58 {dimension_numbers = #tpu.dot_dimension_numbers<[1], [0], [0], [1], [0, 0, 1, 1], [], []>} : vector<8x8xbf16>, vector<8x16xbf16>, vector<8x16xf32> -> vector<8x16xf32>
      %c0_59 = arith.constant 0 : index
      %c0_60 = arith.constant 0 : index
      %107 = vector.load %arg15[%c0_59, %c0_60] : memref<16x128xf32, #tpu.memory_space<vmem>>, vector<8x128xf32>
      %108 = arith.truncf %106 : vector<8x16xf32> to vector<8x16xbf16>
      %cst_61 = arith.constant dense<0.000000e+00> : vector<8x128xf32>
      %109 = tpu.matmul %108, %90, %cst_61 {dimension_numbers = #tpu.dot_dimension_numbers<[1], [0], [0], [1], [0, 0, 1, 1], [], []>} : vector<8x16xbf16>, vector<16x128xbf16>, vector<8x128xf32> -> vector<8x128xf32>
      %110 = arith.addf %107, %109 : vector<8x128xf32>
      %c0_62 = arith.constant 0 : index
      %c0_63 = arith.constant 0 : index
      %111 = vector.load %arg15[%c0_62, %c0_63] : memref<16x128xf32, #tpu.memory_space<vmem>>, vector<8x128xf32>
      tpu.vector_store %arg15[%c0_62, %c0_63], %110 {strides = array<i32>} : memref<16x128xf32, #tpu.memory_space<vmem>>, vector<8x128xf32>,
      %112 = vector.extract_strided_slice %83 {offsets = [8, 0], sizes = [8, 16], strides = [1, 1]} : vector<16x16xbf16> to vector<8x16xbf16>
      %113 = vector.extract_strided_slice %85 {offsets = [8, 0], sizes = [8, 16], strides = [1, 1]} : vector<16x16xbf16> to vector<8x16xbf16>
      %114 = vector.extract_strided_slice %87 {offsets = [8, 0], sizes = [8, 16], strides = [1, 1]} : vector<16x16xbf16> to vector<8x16xbf16>
      %cst_64 = arith.constant dense<0.000000e+00> : vector<8x8xf32>
      %115 = tpu.matmul %112, %113, %cst_64 {dimension_numbers = #tpu.dot_dimension_numbers<[1], [1], [0], [0], [0, 0, 1, 0], [], []>} : vector<8x16xbf16>, vector<8x16xbf16>, vector<8x8xf32> -> vector<8x8xf32>
      %cst_65 = arith.constant dense<0xFF800000> : vector<8xf32>
      %116 = vector.multi_reduction <maximumf>, %115, %cst_65 [1] : vector<8x8xf32> to vector<8xf32>
      %117 = vector.shape_cast %116 : vector<8xf32> to vector<8x1xf32>
      %118 = vector.broadcast %117 : vector<8x1xf32> to vector<8x8xf32>
      %119 = arith.subf %115, %118 : vector<8x8xf32>
      %120 = math.exp %119 : vector<8x8xf32>
      %cst_66 = arith.constant dense<0.000000e+00> : vector<8xf32>
      %121 = vector.multi_reduction <add>, %120, %cst_66 [1] : vector<8x8xf32> to vector<8xf32>
      %122 = vector.shape_cast %121 : vector<8xf32> to vector<8x1xf32>
      %123 = tpu.reciprocal %122 : vector<8x1xf32> -> vector<8x1xf32>
      %124 = vector.broadcast %123 : vector<8x1xf32> to vector<8x8xf32>
      %125 = arith.mulf %120, %124 : vector<8x8xf32>
      %126 = arith.truncf %125 : vector<8x8xf32> to vector<8x8xbf16>
      %cst_67 = arith.constant dense<0.000000e+00> : vector<8x16xf32>
      %127 = tpu.matmul %126, %114, %cst_67 {dimension_numbers = #tpu.dot_dimension_numbers<[1], [0], [0], [1], [0, 0, 1, 1], [], []>} : vector<8x8xbf16>, vector<8x16xbf16>, vector<8x16xf32> -> vector<8x16xf32>
      %c8 = arith.constant 8 : index
      %c0_68 = arith.constant 0 : index
      %128 = vector.load %arg15[%c8, %c0_68] : memref<16x128xf32, #tpu.memory_space<vmem>>, vector<8x128xf32>
      %129 = arith.truncf %127 : vector<8x16xf32> to vector<8x16xbf16>
      %cst_69 = arith.constant dense<0.000000e+00> : vector<8x128xf32>
      %130 = tpu.matmul %129, %90, %cst_69 {dimension_numbers = #tpu.dot_dimension_numbers<[1], [0], [0], [1], [0, 0, 1, 1], [], []>} : vector<8x16xbf16>, vector<16x128xbf16>, vector<8x128xf32> -> vector<8x128xf32>
      %131 = arith.addf %128, %130 : vector<8x128xf32>
      %c8_70 = arith.constant 8 : index
      %c0_71 = arith.constant 0 : index
      %132 = vector.load %arg15[%c8_70, %c0_71] : memref<16x128xf32, #tpu.memory_space<vmem>>, vector<8x128xf32>
      tpu.vector_store %arg15[%c8_70, %c0_71], %131 {strides = array<i32>} : memref<16x128xf32, #tpu.memory_space<vmem>>, vector<8x128xf32>,
    }
    %c8_i32_15 = arith.constant 8 : i32
    %c0_16 = arith.constant 0 : index
    %c0_17 = arith.constant 0 : index
    %c0_18 = arith.constant 0 : index
    %29 = vector.load %arg1[%c0_16, %c0_17, %c0_18] : memref<2x8x128xf32, #tpu.memory_space<vmem>>, vector<2x8x128xf32>
    %30 = vector.shape_cast %29 : vector<2x8x128xf32> to vector<16x128xf32>
    %c0_19 = arith.constant 0 : index
    %c0_20 = arith.constant 0 : index
    %31 = vector.load %arg15[%c0_19, %c0_20] : memref<16x128xf32, #tpu.memory_space<vmem>>, vector<16x128xf32>
    %32 = arith.addf %30, %31 : vector<16x128xf32>
    %c0_21 = arith.constant 0 : index
    %c0_22 = arith.constant 0 : index
    %33 = vector.load %arg6[%c0_21, %c0_22] : memref<1x128xf32, #tpu.memory_space<vmem>>, vector<1x128xf32>
    %34 = vector.broadcast %33 : vector<1x128xf32> to vector<16x128xf32>
    %35 = arith.addf %32, %34 : vector<16x128xf32>
    %c0_23 = arith.constant 0 : index
    %c0_24 = arith.constant 0 : index
    %36 = vector.load %arg7[%c0_23, %c0_24] : memref<1x128xf32, #tpu.memory_space<vmem>>, vector<1x128xf32>
    %c0_25 = arith.constant 0 : index
    %c0_26 = arith.constant 0 : index
    %37 = vector.load %arg8[%c0_25, %c0_26] : memref<1x128xf32, #tpu.memory_space<vmem>>, vector<1x128xf32>
    %cst_27 = arith.constant dense<0.000000e+00> : vector<16xf32>
    %38 = vector.multi_reduction <add>, %35, %cst_27 [1] : vector<16x128xf32> to vector<16xf32>
    %39 = vector.shape_cast %38 : vector<16xf32> to vector<16x1xf32>
    %cst_28 = arith.constant 1.280000e+02 : f32
    %40 = vector.broadcast %cst_28 : f32 to vector<16x1xf32>
    %41 = arith.divf %39, %40 : vector<16x1xf32>
    %42 = vector.broadcast %41 : vector<16x1xf32> to vector<16x128xf32>
    %43 = arith.subf %35, %42 : vector<16x128xf32>
    %44 = arith.mulf %43, %43 : vector<16x128xf32>
    %cst_29 = arith.constant dense<0.000000e+00> : vector<16xf32>
    %45 = vector.multi_reduction <add>, %44, %cst_29 [1] : vector<16x128xf32> to vector<16xf32>
    %46 = vector.shape_cast %45 : vector<16xf32> to vector<16x1xf32>
    %cst_30 = arith.constant 1.280000e+02 : f32
    %47 = vector.broadcast %cst_30 : f32 to vector<16x1xf32>
    %48 = arith.divf %46, %47 : vector<16x1xf32>
    %cst_31 = arith.constant 9.99999974E-6 : f32
    %49 = vector.broadcast %cst_31 : f32 to vector<16x1xf32>
    %50 = arith.addf %48, %49 : vector<16x1xf32>
    %51 = math.rsqrt %50 : vector<16x1xf32>
    %52 = vector.broadcast %51 : vector<16x1xf32> to vector<16x128xf32>
    %53 = arith.mulf %43, %52 : vector<16x128xf32>
    %54 = vector.broadcast %36 : vector<1x128xf32> to vector<16x128xf32>
    %55 = arith.mulf %53, %54 : vector<16x128xf32>
    %56 = vector.broadcast %37 : vector<1x128xf32> to vector<16x128xf32>
    %57 = arith.addf %55, %56 : vector<16x128xf32>
    %58 = arith.truncf %57 : vector<16x128xf32> to vector<16x128xbf16>
    %c0_32 = arith.constant 0 : index
    %c0_33 = arith.constant 0 : index
    %59 = vector.load %arg9[%c0_32, %c0_33] : memref<128x512xbf16, #tpu.memory_space<vmem>>, vector<128x512xbf16>
    %cst_34 = arith.constant dense<0.000000e+00> : vector<16x512xf32>
    %60 = tpu.matmul %58, %59, %cst_34 {dimension_numbers = #tpu.dot_dimension_numbers<[1], [0], [0], [1], [0, 0, 1, 1], [], []>} : vector<16x128xbf16>, vector<128x512xbf16>, vector<16x512xf32> -> vector<16x512xf32>
    %c0_35 = arith.constant 0 : index
    %c0_36 = arith.constant 0 : index
    %61 = vector.load %arg10[%c0_35, %c0_36] : memref<1x512xf32, #tpu.memory_space<vmem>>, vector<1x512xf32>
    %62 = vector.broadcast %61 : vector<1x512xf32> to vector<16x512xf32>
    %63 = arith.addf %60, %62 : vector<16x512xf32>
    %cst_37 = arith.constant 0.000000e+00 : f32
    %64 = vector.broadcast %cst_37 : f32 to vector<16x512xf32>
    %65 = arith.maximumf %63, %64 : vector<16x512xf32>
    %66 = arith.truncf %65 : vector<16x512xf32> to vector<16x512xbf16>
    %c0_38 = arith.constant 0 : index
    %c0_39 = arith.constant 0 : index
    %67 = vector.load %arg11[%c0_38, %c0_39] : memref<512x128xbf16, #tpu.memory_space<vmem>>, vector<512x128xbf16>
    %cst_40 = arith.constant dense<0.000000e+00> : vector<16x128xf32>
    %68 = tpu.matmul %66, %67, %cst_40 {dimension_numbers = #tpu.dot_dimension_numbers<[1], [0], [0], [1], [0, 0, 1, 1], [], []>} : vector<16x512xbf16>, vector<512x128xbf16>, vector<16x128xf32> -> vector<16x128xf32>
    %c0_41 = arith.constant 0 : index
    %c0_42 = arith.constant 0 : index
    %69 = vector.load %arg12[%c0_41, %c0_42] : memref<1x128xf32, #tpu.memory_space<vmem>>, vector<1x128xf32>
    %70 = vector.broadcast %69 : vector<1x128xf32> to vector<16x128xf32>
    %71 = arith.addf %68, %70 : vector<16x128xf32>
    %72 = arith.addf %35, %71 : vector<16x128xf32>
    %73 = vector.shape_cast %72 : vector<16x128xf32> to vector<2x8x128xf32>
    %c0_43 = arith.constant 0 : index
    %c0_44 = arith.constant 0 : index
    %c0_45 = arith.constant 0 : index
    %74 = vector.load %arg13[%c0_43, %c0_44, %c0_45] : memref<2x8x128xf32, #tpu.memory_space<vmem>>, vector<2x8x128xf32>
    tpu.vector_store %arg13[%c0_43, %c0_44, %c0_45], %73 {strides = array<i32>} : memref<2x8x128xf32, #tpu.memory_space<vmem>>, vector<2x8x128xf32>,
    return
  }
  func.func @transform_0(%arg0: i32) -> (i32, i32, i32) {
    %c0_i32 = arith.constant 0 : i32
    %c0_i32_0 = arith.constant 0 : i32
    %c0_i32_1 = arith.constant 0 : i32
    return %arg0, %c0_i32, %c0_i32_0 : i32, i32, i32
  }
  func.func @transform_1(%arg0: i32) -> (i32, i32) {
    %c0_i32 = arith.constant 0 : i32
    %c0_i32_0 = arith.constant 0 : i32
    %c0_i32_1 = arith.constant 0 : i32
    return %c0_i32, %c0_i32_0 : i32, i32
  }
  func.func @transform_2(%arg0: i32) -> (i32, i32) {
    %c0_i32 = arith.constant 0 : i32
    %c0_i32_0 = arith.constant 0 : i32
    %c0_i32_1 = arith.constant 0 : i32
    return %c0_i32, %c0_i32_0 : i32, i32
  }
  func.func @transform_3(%arg0: i32) -> (i32, i32, i32) {
    %c0_i32 = arith.constant 0 : i32
    %c0_i32_0 = arith.constant 0 : i32
    %c0_i32_1 = arith.constant 0 : i32
    %c0_i32_2 = arith.constant 0 : i32
    return %c0_i32, %c0_i32_0, %c0_i32_1 : i32, i32, i32
  }
  func.func @transform_4(%arg0: i32) -> (i32, i32, i32) {
    %c0_i32 = arith.constant 0 : i32
    %c0_i32_0 = arith.constant 0 : i32
    %c0_i32_1 = arith.constant 0 : i32
    %c0_i32_2 = arith.constant 0 : i32
    return %c0_i32, %c0_i32_0, %c0_i32_1 : i32, i32, i32
  }
  func.func @transform_5(%arg0: i32) -> (i32, i32) {
    %c0_i32 = arith.constant 0 : i32
    %c0_i32_0 = arith.constant 0 : i32
    %c0_i32_1 = arith.constant 0 : i32
    return %c0_i32, %c0_i32_0 : i32, i32
  }
  func.func @transform_6(%arg0: i32) -> (i32, i32) {
    %c0_i32 = arith.constant 0 : i32
    %c0_i32_0 = arith.constant 0 : i32
    %c0_i32_1 = arith.constant 0 : i32
    return %c0_i32, %c0_i32_0 : i32, i32
  }
  func.func @transform_7(%arg0: i32) -> (i32, i32) {
    %c0_i32 = arith.constant 0 : i32
    %c0_i32_0 = arith.constant 0 : i32
    %c0_i32_1 = arith.constant 0 : i32
    return %c0_i32, %c0_i32_0 : i32, i32
  }
  func.func @transform_8(%arg0: i32) -> (i32, i32) {
    %c0_i32 = arith.constant 0 : i32
    %c0_i32_0 = arith.constant 0 : i32
    %c0_i32_1 = arith.constant 0 : i32
    return %c0_i32, %c0_i32_0 : i32, i32
  }
  func.func @transform_9(%arg0: i32) -> (i32, i32) {
    %c0_i32 = arith.constant 0 : i32
    %c0_i32_0 = arith.constant 0 : i32
    %c0_i32_1 = arith.constant 0 : i32
    return %c0_i32, %c0_i32_0 : i32, i32
  }
  func.func @transform_10(%arg0: i32) -> (i32, i32) {
    %c0_i32 = arith.constant 0 : i32
    %c0_i32_0 = arith.constant 0 : i32
    %c0_i32_1 = arith.constant 0 : i32
    return %c0_i32, %c0_i32_0 : i32, i32
  }
  func.func @transform_11(%arg0: i32) -> (i32, i32) {
    %c0_i32 = arith.constant 0 : i32
    %c0_i32_0 = arith.constant 0 : i32
    %c0_i32_1 = arith.constant 0 : i32
    return %c0_i32, %c0_i32_0 : i32, i32
  }
  func.func @transform_12(%arg0: i32) -> (i32, i32, i32) {
    %c0_i32 = arith.constant 0 : i32
    %c0_i32_0 = arith.constant 0 : i32
    %c0_i32_1 = arith.constant 0 : i32
    return %arg0, %c0_i32, %c0_i32_0 : i32, i32, i32
  }
}

</mosaic_0001>

<llo_original>
// kernel: tpu_custom_call.1
$region0: #{tpu_custom_call.1}
  #allocation0 [shape = 'u32[]', space=smem, size = 0x4, offset = 0x4, fixed_abs, tag = 'smem constant byte address 0x4 - core index']
  #allocation1 [shape = 'u32[144,128]{1,0:T(1,128)}', space=vmem, size = 0x12000, scoped, tag = 'internal scratch']
  #allocation2 [shape = 'bf16[16,128]{1,0:T(16,128)(2,1)}', space=vmem, size = 0x1000, scoped, tag = 'scratch operand']
  #allocation3 [shape = 'f32[16,128]{1,0:T(8,128)}', space=vmem, size = 0x2000, scoped, tag = 'scratch operand']
  %s0 = inlined_call_operand.vmem [shape: f32[2,8,128], index: 0, kind: input, shape index: {}]
  %s1 = inlined_call_operand.vmem [shape: f32[1,128], index: 1, kind: input, shape index: {}]
  %s2 = inlined_call_operand.vmem [shape: f32[1,128], index: 2, kind: input, shape index: {}]
  %s3 = inlined_call_operand.vmem [shape: bf16[8,128,48], index: 3, kind: input, shape index: {}]
  %s4 = inlined_call_operand.vmem [shape: bf16[8,16,128], index: 4, kind: input, shape index: {}]
  %s5 = inlined_call_operand.vmem [shape: f32[1,128], index: 5, kind: input, shape index: {}]
  %s6 = inlined_call_operand.vmem [shape: f32[1,128], index: 6, kind: input, shape index: {}]
  %s7 = inlined_call_operand.vmem [shape: f32[1,128], index: 7, kind: input, shape index: {}]
  %s8 = inlined_call_operand.vmem [shape: bf16[128,512], index: 8, kind: input, shape index: {}]
  %s9 = inlined_call_operand.vmem [shape: f32[1,512], index: 9, kind: input, shape index: {}]
  %s10 = inlined_call_operand.vmem [shape: bf16[512,128], index: 10, kind: input, shape index: {}]
  %s11 = inlined_call_operand.vmem [shape: f32[1,128], index: 11, kind: input, shape index: {}]
  %s12 = inlined_call_operand.hbm [shape: f32[2,8,128], index: 12, kind: output, shape index: {}]
  %s13 = sld [smem:[#allocation0]]
  $region65: #{tpu_custom_call.1} parent=0
    _
  %s15 = ssub.s32 1, %s13
  %s16 = scalar_select 0, %s15, %s13
  $region1: #{tpu_custom_call.1} parent=0
    #allocation4 [shape = 'u8[8192]{0}', space=vmem, size = 0x2000, scoped, tag = 'output window, operand 0, single buffered']
    #allocation5 [shape = 's32[1]{0}', space=sflag, size = 0x4, scoped, tag = 'scoped memory for tpu_custom_call.1']
    %17 = vsyncpa [#allocation5], 0
    // Predicated region
    $region2: #{tpu_custom_call.1} parent=1 // pred_check
      _
    $region3: #{tpu_custom_call.1} parent=1 // pred_check_branch
      %19 = sbr.rel (0) target = $region5
    $region4: #{tpu_custom_call.1} parent=1 // pred_region
      _
    $region5: #{tpu_custom_call.1} parent=1 // pred_fallthru
      _
    // Predicated region
    $region6: #{tpu_custom_call.1} parent=1 // pred_check
      _
    $region7: #{tpu_custom_call.1} parent=1 // pred_check_branch
      %21 = sbr.rel (0) target = $region9
    $region8: #{tpu_custom_call.1} parent=1 // pred_region
      _
    $region9: #{tpu_custom_call.1} parent=1 // pred_fallthru
      _
    // Predicated region
    $region10: #{tpu_custom_call.1} parent=1 // pred_check
      _
    $region11: #{tpu_custom_call.1} parent=1 // pred_check_branch
      %23 = sbr.rel (0) target = $region13
    $region12: #{tpu_custom_call.1} parent=1 // pred_region
      _
    $region13: #{tpu_custom_call.1} parent=1 // pred_fallthru
      _
    // Predicated region
    $region14: #{tpu_custom_call.1} parent=1 // pred_check
      _
    $region15: #{tpu_custom_call.1} parent=1 // pred_check_branch
      %25 = sbr.rel (0) target = $region17
    $region16: #{tpu_custom_call.1} parent=1 // pred_region
      _
    $region17: #{tpu_custom_call.1} parent=1 // pred_fallthru
      _
    // Predicated region
    $region18: #{tpu_custom_call.1} parent=1 // pred_check
      _
    $region19: #{tpu_custom_call.1} parent=1 // pred_check_branch
      %27 = sbr.rel (0) target = $region21
    $region20: #{tpu_custom_call.1} parent=1 // pred_region
      _
    $region21: #{tpu_custom_call.1} parent=1 // pred_fallthru
      _
    // Predicated region
    $region22: #{tpu_custom_call.1} parent=1 // pred_check
      _
    $region23: #{tpu_custom_call.1} parent=1 // pred_check_branch
      %29 = sbr.rel (0) target = $region25
    $region24: #{tpu_custom_call.1} parent=1 // pred_region
      _
    $region25: #{tpu_custom_call.1} parent=1 // pred_fallthru
      _
    // Predicated region
    $region26: #{tpu_custom_call.1} parent=1 // pred_check
      _
    $region27: #{tpu_custom_call.1} parent=1 // pred_check_branch
      %31 = sbr.rel (0) target = $region29
    $region28: #{tpu_custom_call.1} parent=1 // pred_region
      _
    $region29: #{tpu_custom_call.1} parent=1 // pred_fallthru
      _
    // Predicated region
    $region30: #{tpu_custom_call.1} parent=1 // pred_check
      _
    $region31: #{tpu_custom_call.1} parent=1 // pred_check_branch
      %33 = sbr.rel (0) target = $region33
    $region32: #{tpu_custom_call.1} parent=1 // pred_region
      _
    $region33: #{tpu_custom_call.1} parent=1 // pred_fallthru
      _
    // Predicated region
    $region34: #{tpu_custom_call.1} parent=1 // pred_check
      _
    $region35: #{tpu_custom_call.1} parent=1 // pred_check_branch
      %35 = sbr.rel (0) target = $region37
    $region36: #{tpu_custom_call.1} parent=1 // pred_region
      _
    $region37: #{tpu_custom_call.1} parent=1 // pred_fallthru
      _
    // Predicated region
    $region38: #{tpu_custom_call.1} parent=1 // pred_check
      _
    $region39: #{tpu_custom_call.1} parent=1 // pred_check_branch
      %37 = sbr.rel (0) target = $region41
    $region40: #{tpu_custom_call.1} parent=1 // pred_region
      _
    $region41: #{tpu_custom_call.1} parent=1 // pred_fallthru
      _
    // Predicated region
    $region42: #{tpu_custom_call.1} parent=1 // pred_check
      _
    $region43: #{tpu_custom_call.1} parent=1 // pred_check_branch
      %39 = sbr.rel (0) target = $region45
    $region44: #{tpu_custom_call.1} parent=1 // pred_region
      _
    $region45: #{tpu_custom_call.1} parent=1 // pred_fallthru
      _
    // Predicated region
    $region46: #{tpu_custom_call.1} parent=1 // pred_check
      _
    $region47: #{tpu_custom_call.1} parent=1 // pred_check_branch
      %41 = sbr.rel (0) target = $region49
    $region48: #{tpu_custom_call.1} parent=1 // pred_region
      _
    $region49: #{tpu_custom_call.1} parent=1 // pred_fallthru
      _
    %v43 = vld [vmem:[%s0] sm:$0xff]
    %v44 = vld [vmem:[%s0 + $0x8] sm:$0xff]
    %v45 = vld [vmem:[%s1] sm:$0x1]
    %v46 = vld [vmem:[%s2] sm:$0x1]
    %47 = vadd.xlane.f32.xlu0 %v43
    %v48 = vpop.xlane.xlu0 %47
    %49 = vadd.xlane.f32.xlu0 %v44
    %v50 = vpop.xlane.xlu0 %49
    %v51 = vrcp.pop 128.0
    %v52 = vmul.f32 %v48, %v51
    %v53 = vmul.f32 %v50, %v51
    %v54 = vsub.f32 %v43, %v52
    %v55 = vsub.f32 %v44, %v53
    %v56 = vmul.f32 %v54, %v54
    %v57 = vmul.f32 %v55, %v55
    %58 = vadd.xlane.f32.xlu0 %v56
    %v59 = vpop.xlane.xlu0 %58
    %60 = vadd.xlane.f32.xlu0 %v57
    %v61 = vpop.xlane.xlu0 %60
    %v62 = vmul.f32 %v59, %v51
    %v63 = vmul.f32 %v61, %v51
    %v64 = vadd.f32 %v62, 1e-05
    %v65 = vadd.f32 %v63, 1e-05
    %v66 = vrsqrt.pop %v64
    %v67 = vrsqrt.pop %v65
    %v68 = vmul.f32 %v54, %v66
    %v69 = vmul.f32 %v55, %v67
    %v71 = vlaneseq
    %v72 = vshrl.u32 %v71, 7
    %v73 = vsub.s32 0, %v72
    %v74 = vrot.slane %v45, %v73
    %v76 = vmul.f32 %v68, %v74
    %v77 = vmul.f32 %v69, %v74
    %v79 = vlaneseq
    %v80 = vshrl.u32 %v79, 7
    %v81 = vsub.s32 0, %v80
    %v82 = vrot.slane %v46, %v81
    %v84 = vadd.f32 %v76, %v82
    %v85 = vadd.f32 %v77, %v82
    %v86 = vpack.c.bf16 %v85, %v84
    %87 = vst [vmem:[#allocation2] sm:$0xff] %v86
    %88 = vst [vmem:[#allocation3] sm:$0xff] 0.0
    %89 = vst [vmem:[#allocation3 + $0x8] sm:$0xff] 0.0
    loop: start=0, step=1, limit=8
    $region50: #{tpu_custom_call.1} parent=1 // loop_pre_header
      _
    $region51: #{tpu_custom_call.1} parent=1 // loop_header
      %s91 = sphi 0, %s95
      %p92 = scmp.ge.s32.totalorder %s91, 8
    $region52: #{tpu_custom_call.1} parent=1 // loop_header_branch
      %94 = sbr.rel (%p92) target = $region56
    $region53: #{tpu_custom_call.1} parent=1 // loop_body
      %s96 = smul.u32 %s91, 16
      %s97 = smul.addr %s96, 4
      %s98 = scalar_lea.vmem %s3, %s97
      %v99 = vld [vmem:[%s98] sm:$0xf]
      %v100 = vld [vmem:[%s98 + $0x4] sm:$0xf]
      %v101 = vld [vmem:[%s98 + $0x8] sm:$0xf]
      %v102 = vld [vmem:[%s98 + $0xc] sm:$0xf]
      %v103 = vld [vmem:[%s98 + $0x10] sm:$0xf]
      %v104 = vld [vmem:[%s98 + $0x14] sm:$0xf]
      %v105 = vld [vmem:[%s98 + $0x18] sm:$0xf]
      %v106 = vld [vmem:[%s98 + $0x1c] sm:$0xf]
      %v107 = vld [vmem:[%s98 + $0x20] sm:$0xf]
      %v108 = vld [vmem:[%s98 + $0x24] sm:$0xf]
      %v109 = vld [vmem:[%s98 + $0x28] sm:$0xf]
      %v110 = vld [vmem:[%s98 + $0x2c] sm:$0xf]
      %v111 = vld [vmem:[%s98 + $0x30] sm:$0xf]
      %v112 = vld [vmem:[%s98 + $0x34] sm:$0xf]
      %v113 = vld [vmem:[%s98 + $0x38] sm:$0xf]
      %v114 = vld [vmem:[%s98 + $0x3c] sm:$0xf]
      %v115 = vld [vmem:[#allocation2] sm:$0xff]
      %v132 = vunpack.c.l.b16 %v99
      %v133 = vunpack.c.l.b16 %v100
      %v134 = vunpack.c.l.b16 %v101
      %v135 = vunpack.c.l.b16 %v102
      %v136 = vunpack.c.l.b16 %v103
      %v137 = vunpack.c.l.b16 %v104
      %v138 = vunpack.c.l.b16 %v105
      %v139 = vunpack.c.l.b16 %v106
      %v140 = vunpack.c.l.b16 %v107
      %v141 = vunpack.c.l.b16 %v108
      %v142 = vunpack.c.l.b16 %v109
      %v143 = vunpack.c.l.b16 %v110
      %v144 = vunpack.c.l.b16 %v111
      %v145 = vunpack.c.l.b16 %v112
      %v146 = vunpack.c.l.b16 %v113
      %v147 = vunpack.c.l.b16 %v114
      %v148 = vpack.c.b16 %v133, %v132
      %v149 = vpack.c.b16 %v135, %v134
      %v150 = vpack.c.b16 %v137, %v136
      %v151 = vpack.c.b16 %v139, %v138
      %v152 = vpack.c.b16 %v141, %v140
      %v153 = vpack.c.b16 %v143, %v142
      %v154 = vpack.c.b16 %v145, %v144
      %v155 = vpack.c.b16 %v147, %v146
      %164 = vmatprep.subr.bf16.mxu0 0
      %165 = vmatpush1.bf16.msra.mxu0 %v148
      %166 = vmatprep.subr.bf16.mxu0 0
      %167 = vmatpush1.bf16.msra.mxu0 %v149
      %168 = vmatprep.subr.bf16.mxu0 0
      %169 = vmatpush1.bf16.msra.mxu0 %v150
      %170 = vmatprep.subr.bf16.mxu0 0
      %171 = vmatpush1.bf16.msra.mxu0 %v151
      %172 = vmatprep.subr.bf16.mxu0 0
      %173 = vmatpush1.bf16.msra.mxu0 %v152
      %174 = vmatprep.subr.bf16.mxu0 0
      %175 = vmatpush1.bf16.msra.mxu0 %v153
      %176 = vmatprep.subr.bf16.mxu0 0
      %177 = vmatpush1.bf16.msra.mxu0 %v154
      %178 = vmatprep.subr.bf16.mxu0 0
      %179 = vmatpush1.bf16.msra.mxu0 %v155
      %180 = vmatprep.subr.bf16.mxu0 0
      %181 = vmatpush1.bf16.msra.mxu0 0
      %182 = vmatprep.subr.bf16.mxu0 0
      %183 = vmatpush1.bf16.msra.mxu0 0
      %184 = vmatprep.subr.bf16.mxu0 0
      %185 = vmatpush1.bf16.msra.mxu0 0
      %186 = vmatprep.subr.bf16.mxu0 0
      %187 = vmatpush1.bf16.msra.mxu0 0
      %188 = vmatprep.subr.bf16.mxu0 0
      %189 = vmatpush1.bf16.msra.mxu0 0
      %190 = vmatprep.subr.bf16.mxu0 0
      %191 = vmatpush1.bf16.msra.mxu0 0
      %192 = vmatprep.subr.bf16.mxu0 0
      %193 = vmatpush1.bf16.msra.mxu0 0
      %194 = vmatprep.subr.bf16.mxu0 0
      %195 = vmatpush1.bf16.msra.mxu0 0
      %196 = vmatprep.mubr.bf16.mxu0 0
      %197 = vmatmul.mubr.bf16.gmra.mrb[0].mxu0 %v115
      %v198 = vpop.f32.mrb[0].mxu0
      %v199 = vadd.f32 0.0, %v198
      %v200 = vpop.f32.mrb[0].mxu0
      %v201 = vpop.f32.mrb[0].mxu0
      %v202 = vadd.f32 0.0, %v201
      %v203 = vpop.f32.mrb[0].mxu0
      %204 = vdwg.mxu0
      %v205 = vpack.c.bf16 %v202, %v199
      %s206 = smul.u32 %s91, 2
      %s207 = smul.addr %s206, 4
      %s208 = scalar_lea.vmem %s4, %s207
      %v209 = vld [vmem:[%s208] sm:$0xf]
      %v210 = vld [vmem:[%s208 + $0x4] sm:$0xf]
      %212 = vrot.lane.b32.xlu0 %v205, 112
      %v213 = vpop.permute.xlu0 %212
      %vm214 = vcmask 130048
      %v216 = vsel %vm214, %v205, 0
      %v219 = vsel %vm214, %v213, 0
      %221 = vmatprep.subr.bf16.mxu0 0
      %222 = vmatpush1.bf16.xpose.msra.mxu0 %v219
      %223 = vmatprep.subr.bf16.mxu0 0
      %224 = vmatpush1.bf16.xpose.msra.mxu0 0
      %225 = vmatprep.subr.bf16.mxu0 0
      %226 = vmatpush1.bf16.xpose.msra.mxu0 0
      %227 = vmatprep.subr.bf16.mxu0 0
      %228 = vmatpush1.bf16.xpose.msra.mxu0 0
      %229 = vmatprep.subr.bf16.mxu0 0
      %230 = vmatpush1.bf16.xpose.msra.mxu0 0
      %231 = vmatprep.subr.bf16.mxu0 0
      %232 = vmatpush1.bf16.xpose.msra.mxu0 0
      %233 = vmatprep.subr.bf16.mxu0 0
      %234 = vmatpush1.bf16.xpose.msra.mxu0 0
      %235 = vmatprep.subr.bf16.mxu0 0
      %236 = vmatpush1.bf16.xpose.msra.mxu0 0
      %237 = vmatprep.subr.bf16.mxu0 0
      %238 = vmatpush1.bf16.xpose.msra.mxu0 0
      %239 = vmatprep.subr.bf16.mxu0 0
      %240 = vmatpush1.bf16.xpose.msra.mxu0 0
      %241 = vmatprep.subr.bf16.mxu0 0
      %242 = vmatpush1.bf16.xpose.msra.mxu0 0
      %243 = vmatprep.subr.bf16.mxu0 0
      %244 = vmatpush1.bf16.xpose.msra.mxu0 0
      %245 = vmatprep.subr.bf16.mxu0 0
      %246 = vmatpush1.bf16.xpose.msra.mxu0 0
      %247 = vmatprep.subr.bf16.mxu0 0
      %248 = vmatpush1.bf16.xpose.msra.mxu0 0
      %249 = vmatprep.subr.bf16.mxu0 0
      %250 = vmatpush1.bf16.xpose.msra.mxu0 0
      %251 = vmatprep.subr.bf16.mxu0 0
      %252 = vmatpush1.bf16.xpose.msra.mxu0 0
      %253 = vmatprep.mubr.bf16.mxu0 0
      %254 = vmatmul.mubr.bf16.gmra.mrb[0].mxu0 %v216
      %v255 = vpop.f32.mrb[0].mxu0
      %v256 = vadd.f32 0.0, %v255
      %v257 = vpop.f32.mrb[0].mxu0
      %v258 = vpop.f32.mrb[0].mxu0
      %v259 = vpop.f32.mrb[0].mxu0
      %260 = vdwg.mxu0
      %vm261 = vcmask 64512
      %v262 = vsel %vm261, %v256, -inf
      %263 = vmax.xlane.f32.xlu0 %v262
      %v264 = vpop.xlane.xlu0 %263
      %v265 = vsub.f32 %v256, %v264
      %v266 = vmul.f32 %v265, 1.442695
      %v267 = vpow.pop %v266
      %v268 = vsel %vm261, %v267, 0.0
      %269 = vadd.xlane.f32.xlu0 %v268
      %v270 = vpop.xlane.xlu0 %269
      %v271 = vrcp.pop %v270
      %v272 = vmul.f32 %v267, %v271
      %v273 = vpack.c.bf16 %v272, %v272
      %274 = vrot.lane.b32.xlu0 %v205, 96
      %v275 = vpop.permute.xlu0 %274
      %v277 = vsel %vm261, %v273, 0
      %vm279 = vcmask 1043456
      %v281 = vsel %vm279, %v275, 0
      %283 = vmatprep.subr.bf16.mxu0 0
      %284 = vmatpush1.bf16.msra.mxu0 %v281
      %285 = vmatprep.subr.bf16.mxu0 0
      %286 = vmatpush1.bf16.msra.mxu0 0
      %287 = vmatprep.subr.bf16.mxu0 0
      %288 = vmatpush1.bf16.msra.mxu0 0
      %289 = vmatprep.subr.bf16.mxu0 0
      %290 = vmatpush1.bf16.msra.mxu0 0
      %291 = vmatprep.subr.bf16.mxu0 0
      %292 = vmatpush1.bf16.msra.mxu0 0
      %293 = vmatprep.subr.bf16.mxu0 0
      %294 = vmatpush1.bf16.msra.mxu0 0
      %295 = vmatprep.subr.bf16.mxu0 0
      %296 = vmatpush1.bf16.msra.mxu0 0
      %297 = vmatprep.subr.bf16.mxu0 0
      %298 = vmatpush1.bf16.msra.mxu0 0
      %299 = vmatprep.subr.bf16.mxu0 0
      %300 = vmatpush1.bf16.msra.mxu0 0
      %301 = vmatprep.subr.bf16.mxu0 0
      %302 = vmatpush1.bf16.msra.mxu0 0
      %303 = vmatprep.subr.bf16.mxu0 0
      %304 = vmatpush1.bf16.msra.mxu0 0
      %305 = vmatprep.subr.bf16.mxu0 0
      %306 = vmatpush1.bf16.msra.mxu0 0
      %307 = vmatprep.subr.bf16.mxu0 0
      %308 = vmatpush1.bf16.msra.mxu0 0
      %309 = vmatprep.subr.bf16.mxu0 0
      %310 = vmatpush1.bf16.msra.mxu0 0
      %311 = vmatprep.subr.bf16.mxu0 0
      %312 = vmatpush1.bf16.msra.mxu0 0
      %313 = vmatprep.subr.bf16.mxu0 0
      %314 = vmatpush1.bf16.msra.mxu0 0
      %315 = vmatprep.mubr.bf16.mxu0 0
      %316 = vmatmul.mubr.bf16.gmra.mrb[0].mxu0 %v277
      %v317 = vpop.f32.mrb[0].mxu0
      %v318 = vadd.f32 0.0, %v317
      %v319 = vpop.f32.mrb[0].mxu0
      %v320 = vpop.f32.mrb[0].mxu0
      %v321 = vpop.f32.mrb[0].mxu0
      %322 = vdwg.mxu0
      %v323 = vld [vmem:[#allocation3] sm:$0xff]
      %v324 = vpack.c.bf16 %v318, %v318
      %v327 = vunpack.c.l.b16 %v209
      %v328 = vunpack.c.l.b16 %v210
      %v329 = vpack.c.b16 %v328, %v327
      %v332 = vsel %vm214, %v324, 0
      %334 = vmatprep.subr.bf16.mxu0 0
      %335 = vmatpush1.bf16.msra.mxu0 %v329
      %336 = vmatprep.subr.bf16.mxu0 0
      %337 = vmatpush1.bf16.msra.mxu0 0
      %338 = vmatprep.subr.bf16.mxu0 0
      %339 = vmatpush1.bf16.msra.mxu0 0
      %340 = vmatprep.subr.bf16.mxu0 0
      %341 = vmatpush1.bf16.msra.mxu0 0
      %342 = vmatprep.subr.bf16.mxu0 0
      %343 = vmatpush1.bf16.msra.mxu0 0
      %344 = vmatprep.subr.bf16.mxu0 0
      %345 = vmatpush1.bf16.msra.mxu0 0
      %346 = vmatprep.subr.bf16.mxu0 0
      %347 = vmatpush1.bf16.msra.mxu0 0
      %348 = vmatprep.subr.bf16.mxu0 0
      %349 = vmatpush1.bf16.msra.mxu0 0
      %350 = vmatprep.subr.bf16.mxu0 0
      %351 = vmatpush1.bf16.msra.mxu0 0
      %352 = vmatprep.subr.bf16.mxu0 0
      %353 = vmatpush1.bf16.msra.mxu0 0
      %354 = vmatprep.subr.bf16.mxu0 0
      %355 = vmatpush1.bf16.msra.mxu0 0
      %356 = vmatprep.subr.bf16.mxu0 0
      %357 = vmatpush1.bf16.msra.mxu0 0
      %358 = vmatprep.subr.bf16.mxu0 0
      %359 = vmatpush1.bf16.msra.mxu0 0
      %360 = vmatprep.subr.bf16.mxu0 0
      %361 = vmatpush1.bf16.msra.mxu0 0
      %362 = vmatprep.subr.bf16.mxu0 0
      %363 = vmatpush1.bf16.msra.mxu0 0
      %364 = vmatprep.subr.bf16.mxu0 0
      %365 = vmatpush1.bf16.msra.mxu0 0
      %366 = vmatprep.mubr.bf16.mxu0 0
      %367 = vmatmul.mubr.bf16.gmra.mrb[0].mxu0 %v332
      %v368 = vpop.f32.mrb[0].mxu0
      %v369 = vadd.f32 0.0, %v368
      %v370 = vpop.f32.mrb[0].mxu0
      %v371 = vpop.f32.mrb[0].mxu0
      %v372 = vpop.f32.mrb[0].mxu0
      %373 = vdwg.mxu0
      %v374 = vadd.f32 %v323, %v369
      %375 = vst [vmem:[#allocation3] sm:$0xff] %v374
      %v376 = vrot.slane %v205, 4
      %377 = vrot.lane.b32.xlu0 %v376, 112
      %v378 = vpop.permute.xlu0 %377
      %v380 = vsel %vm214, %v376, 0
      %v383 = vsel %vm214, %v378, 0
      %385 = vmatprep.subr.bf16.mxu0 0
      %386 = vmatpush1.bf16.xpose.msra.mxu0 %v383
      %387 = vmatprep.subr.bf16.mxu0 0
      %388 = vmatpush1.bf16.xpose.msra.mxu0 0
      %389 = vmatprep.subr.bf16.mxu0 0
      %390 = vmatpush1.bf16.xpose.msra.mxu0 0
      %391 = vmatprep.subr.bf16.mxu0 0
      %392 = vmatpush1.bf16.xpose.msra.mxu0 0
      %393 = vmatprep.subr.bf16.mxu0 0
      %394 = vmatpush1.bf16.xpose.msra.mxu0 0
      %395 = vmatprep.subr.bf16.mxu0 0
      %396 = vmatpush1.bf16.xpose.msra.mxu0 0
      %397 = vmatprep.subr.bf16.mxu0 0
      %398 = vmatpush1.bf16.xpose.msra.mxu0 0
      %399 = vmatprep.subr.bf16.mxu0 0
      %400 = vmatpush1.bf16.xpose.msra.mxu0 0
      %401 = vmatprep.subr.bf16.mxu0 0
      %402 = vmatpush1.bf16.xpose.msra.mxu0 0
      %403 = vmatprep.subr.bf16.mxu0 0
      %404 = vmatpush1.bf16.xpose.msra.mxu0 0
      %405 = vmatprep.subr.bf16.mxu0 0
      %406 = vmatpush1.bf16.xpose.msra.mxu0 0
      %407 = vmatprep.subr.bf16.mxu0 0
      %408 = vmatpush1.bf16.xpose.msra.mxu0 0
      %409 = vmatprep.subr.bf16.mxu0 0
      %410 = vmatpush1.bf16.xpose.msra.mxu0 0
      %411 = vmatprep.subr.bf16.mxu0 0
      %412 = vmatpush1.bf16.xpose.msra.mxu0 0
      %413 = vmatprep.subr.bf16.mxu0 0
      %414 = vmatpush1.bf16.xpose.msra.mxu0 0
      %415 = vmatprep.subr.bf16.mxu0 0
      %416 = vmatpush1.bf16.xpose.msra.mxu0 0
      %417 = vmatprep.mubr.bf16.mxu0 0
      %418 = vmatmul.mubr.bf16.gmra.mrb[0].mxu0 %v380
      %v419 = vpop.f32.mrb[0].mxu0
      %v420 = vadd.f32 0.0, %v419
      %v421 = vpop.f32.mrb[0].mxu0
      %v422 = vpop.f32.mrb[0].mxu0
      %v423 = vpop.f32.mrb[0].mxu0
      %424 = vdwg.mxu0
      %v425 = vsel %vm261, %v420, -inf
      %426 = vmax.xlane.f32.xlu0 %v425
      %v427 = vpop.xlane.xlu0 %426
      %v428 = vsub.f32 %v420, %v427
      %v429 = vmul.f32 %v428, 1.442695
      %v430 = vpow.pop %v429
      %v431 = vsel %vm261, %v430, 0.0
      %432 = vadd.xlane.f32.xlu0 %v431
      %v433 = vpop.xlane.xlu0 %432
      %v434 = vrcp.pop %v433
      %v435 = vmul.f32 %v430, %v434
      %v436 = vpack.c.bf16 %v435, %v435
      %437 = vrot.lane.b32.xlu0 %v376, 96
      %v438 = vpop.permute.xlu0 %437
      %v440 = vsel %vm261, %v436, 0
      %v443 = vsel %vm279, %v438, 0
      %445 = vmatprep.subr.bf16.mxu0 0
      %446 = vmatpush1.bf16.msra.mxu0 %v443
      %447 = vmatprep.subr.bf16.mxu0 0
      %448 = vmatpush1.bf16.msra.mxu0 0
      %449 = vmatprep.subr.bf16.mxu0 0
      %450 = vmatpush1.bf16.msra.mxu0 0
      %451 = vmatprep.subr.bf16.mxu0 0
      %452 = vmatpush1.bf16.msra.mxu0 0
      %453 = vmatprep.subr.bf16.mxu0 0
      %454 = vmatpush1.bf16.msra.mxu0 0
      %455 = vmatprep.subr.bf16.mxu0 0
      %456 = vmatpush1.bf16.msra.mxu0 0
      %457 = vmatprep.subr.bf16.mxu0 0
      %458 = vmatpush1.bf16.msra.mxu0 0
      %459 = vmatprep.subr.bf16.mxu0 0
      %460 = vmatpush1.bf16.msra.mxu0 0
      %461 = vmatprep.subr.bf16.mxu0 0
      %462 = vmatpush1.bf16.msra.mxu0 0
      %463 = vmatprep.subr.bf16.mxu0 0
      %464 = vmatpush1.bf16.msra.mxu0 0
      %465 = vmatprep.subr.bf16.mxu0 0
      %466 = vmatpush1.bf16.msra.mxu0 0
      %467 = vmatprep.subr.bf16.mxu0 0
      %468 = vmatpush1.bf16.msra.mxu0 0
      %469 = vmatprep.subr.bf16.mxu0 0
      %470 = vmatpush1.bf16.msra.mxu0 0
      %471 = vmatprep.subr.bf16.mxu0 0
      %472 = vmatpush1.bf16.msra.mxu0 0
      %473 = vmatprep.subr.bf16.mxu0 0
      %474 = vmatpush1.bf16.msra.mxu0 0
      %475 = vmatprep.subr.bf16.mxu0 0
      %476 = vmatpush1.bf16.msra.mxu0 0
      %477 = vmatprep.mubr.bf16.mxu0 0
      %478 = vmatmul.mubr.bf16.gmra.mrb[0].mxu0 %v440
      %v479 = vpop.f32.mrb[0].mxu0
      %v480 = vadd.f32 0.0, %v479
      %v481 = vpop.f32.mrb[0].mxu0
      %v482 = vpop.f32.mrb[0].mxu0
      %v483 = vpop.f32.mrb[0].mxu0
      %484 = vdwg.mxu0
      %v485 = vld [vmem:[#allocation3 + $0x8] sm:$0xff]
      %v486 = vpack.c.bf16 %v480, %v480
      %v488 = vsel %vm214, %v486, 0
      %490 = vmatprep.subr.bf16.mxu0 0
      %491 = vmatpush1.bf16.msra.mxu0 %v329
      %492 = vmatprep.subr.bf16.mxu0 0
      %493 = vmatpush1.bf16.msra.mxu0 0
      %494 = vmatprep.subr.bf16.mxu0 0
      %495 = vmatpush1.bf16.msra.mxu0 0
      %496 = vmatprep.subr.bf16.mxu0 0
      %497 = vmatpush1.bf16.msra.mxu0 0
      %498 = vmatprep.subr.bf16.mxu0 0
      %499 = vmatpush1.bf16.msra.mxu0 0
      %500 = vmatprep.subr.bf16.mxu0 0
      %501 = vmatpush1.bf16.msra.mxu0 0
      %502 = vmatprep.subr.bf16.mxu0 0
      %503 = vmatpush1.bf16.msra.mxu0 0
      %504 = vmatprep.subr.bf16.mxu0 0
      %505 = vmatpush1.bf16.msra.mxu0 0
      %506 = vmatprep.subr.bf16.mxu0 0
      %507 = vmatpush1.bf16.msra.mxu0 0
      %508 = vmatprep.subr.bf16.mxu0 0
      %509 = vmatpush1.bf16.msra.mxu0 0
      %510 = vmatprep.subr.bf16.mxu0 0
      %511 = vmatpush1.bf16.msra.mxu0 0
      %512 = vmatprep.subr.bf16.mxu0 0
      %513 = vmatpush1.bf16.msra.mxu0 0
      %514 = vmatprep.subr.bf16.mxu0 0
      %515 = vmatpush1.bf16.msra.mxu0 0
      %516 = vmatprep.subr.bf16.mxu0 0
      %517 = vmatpush1.bf16.msra.mxu0 0
      %518 = vmatprep.subr.bf16.mxu0 0
      %519 = vmatpush1.bf16.msra.mxu0 0
      %520 = vmatprep.subr.bf16.mxu0 0
      %521 = vmatpush1.bf16.msra.mxu0 0
      %522 = vmatprep.mubr.bf16.mxu0 0
      %523 = vmatmul.mubr.bf16.gmra.mrb[0].mxu0 %v488
      %v524 = vpop.f32.mrb[0].mxu0
      %v525 = vadd.f32 0.0, %v524
      %v526 = vpop.f32.mrb[0].mxu0
      %v527 = vpop.f32.mrb[0].mxu0
      %v528 = vpop.f32.mrb[0].mxu0
      %529 = vdwg.mxu0
      %v530 = vadd.f32 %v485, %v525
      %531 = vst [vmem:[#allocation3 + $0x8] sm:$0xff] %v530
    $region54: #{tpu_custom_call.1} parent=1 // loop_footer
      %s95 = sadd.s32 1, %s91
    $region55: #{tpu_custom_call.1} parent=1 // loop_footer_branch
      %90 = sbr.rel target = $region51
    $region56: #{tpu_custom_call.1} parent=1 // loop_exit
      _
    %v532 = vld [vmem:[%s0] sm:$0xff]
    %v533 = vld [vmem:[%s0 + $0x8] sm:$0xff]
    %v534 = vld [vmem:[#allocation3] sm:$0xff]
    %v535 = vld [vmem:[#allocation3 + $0x8] sm:$0xff]
    %v536 = vadd.f32 %v532, %v534
    %v537 = vadd.f32 %v533, %v535
    %v538 = vld [vmem:[%s5] sm:$0x1]
    %v540 = vlaneseq
    %v541 = vshrl.u32 %v540, 7
    %v542 = vsub.s32 0, %v541
    %v543 = vrot.slane %v538, %v542
    %v545 = vadd.f32 %v536, %v543
    %v546 = vadd.f32 %v537, %v543
    %v547 = vld [vmem:[%s6] sm:$0x1]
    %v548 = vld [vmem:[%s7] sm:$0x1]
    %549 = vadd.xlane.f32.xlu0 %v545
    %v550 = vpop.xlane.xlu0 %549
    %551 = vadd.xlane.f32.xlu0 %v546
    %v552 = vpop.xlane.xlu0 %551
    %v553 = vmul.f32 %v550, %v51
    %v554 = vmul.f32 %v552, %v51
    %v555 = vsub.f32 %v545, %v553
    %v556 = vsub.f32 %v546, %v554
    %v557 = vmul.f32 %v555, %v555
    %v558 = vmul.f32 %v556, %v556
    %559 = vadd.xlane.f32.xlu0 %v557
    %v560 = vpop.xlane.xlu0 %559
    %561 = vadd.xlane.f32.xlu0 %v558
    %v562 = vpop.xlane.xlu0 %561
    %v563 = vmul.f32 %v560, %v51
    %v564 = vmul.f32 %v562, %v51
    %v565 = vadd.f32 %v563, 1e-05
    %v566 = vadd.f32 %v564, 1e-05
    %v567 = vrsqrt.pop %v565
    %v568 = vrsqrt.pop %v566
    %v569 = vmul.f32 %v555, %v567
    %v570 = vmul.f32 %v556, %v568
    %v572 = vlaneseq
    %v573 = vshrl.u32 %v572, 7
    %v574 = vsub.s32 0, %v573
    %v575 = vrot.slane %v547, %v574
    %v577 = vmul.f32 %v569, %v575
    %v578 = vmul.f32 %v570, %v575
    %v580 = vlaneseq
    %v581 = vshrl.u32 %v580, 7
    %v582 = vsub.s32 0, %v581
    %v583 = vrot.slane %v548, %v582
    %v585 = vadd.f32 %v577, %v583
    %v586 = vadd.f32 %v578, %v583
    %v587 = vpack.c.bf16 %v586, %v585
    %v588 = vld [vmem:[%s8] sm:$0xff]
    %v589 = vld [vmem:[%s8 + $0x8] sm:$0xff]
    %v590 = vld [vmem:[%s8 + $0x10] sm:$0xff]
    %v591 = vld [vmem:[%s8 + $0x18] sm:$0xff]
    %v592 = vld [vmem:[%s8 + $0x20] sm:$0xff]
    %v593 = vld [vmem:[%s8 + $0x28] sm:$0xff]
    %v594 = vld [vmem:[%s8 + $0x30] sm:$0xff]
    %v595 = vld [vmem:[%s8 + $0x38] sm:$0xff]
    %v596 = vld [vmem:[%s8 + $0x40] sm:$0xff]
    %v597 = vld [vmem:[%s8 + $0x48] sm:$0xff]
    %v598 = vld [vmem:[%s8 + $0x50] sm:$0xff]
    %v599 = vld [vmem:[%s8 + $0x58] sm:$0xff]
    %v600 = vld [vmem:[%s8 + $0x60] sm:$0xff]
    %v601 = vld [vmem:[%s8 + $0x68] sm:$0xff]
    %v602 = vld [vmem:[%s8 + $0x70] sm:$0xff]
    %v603 = vld [vmem:[%s8 + $0x78] sm:$0xff]
    %v604 = vld [vmem:[%s8 + $0x80] sm:$0xff]
    %v605 = vld [vmem:[%s8 + $0x88] sm:$0xff]
    %v606 = vld [vmem:[%s8 + $0x90] sm:$0xff]
    %v607 = vld [vmem:[%s8 + $0x98] sm:$0xff]
    %v608 = vld [vmem:[%s8 + $0xa0] sm:$0xff]
    %v609 = vld [vmem:[%s8 + $0xa8] sm:$0xff]
    %v610 = vld [vmem:[%s8 + $0xb0] sm:$0xff]
    %v611 = vld [vmem:[%s8 + $0xb8] sm:$0xff]
    %v612 = vld [vmem:[%s8 + $0xc0] sm:$0xff]
    %v613 = vld [vmem:[%s8 + $0xc8] sm:$0xff]
    %v614 = vld [vmem:[%s8 + $0xd0] sm:$0xff]
    %v615 = vld [vmem:[%s8 + $0xd8] sm:$0xff]
    %v616 = vld [vmem:[%s8 + $0xe0] sm:$0xff]
    %v617 = vld [vmem:[%s8 + $0xe8] sm:$0xff]
    %v618 = vld [vmem:[%s8 + $0xf0] sm:$0xff]
    %v619 = vld [vmem:[%s8 + $0xf8] sm:$0xff]
    %v620 = vld [vmem:[%s9] sm:$0xf]
    %v622 = vlaneseq
    %v623 = vshrl.u32 %v622, 7
    %v624 = vsub.s32 0, %v623
    %v625 = vrot.slane %v620, %v624
    %v626 = vlaneseq
    %v627 = vshrl.u32 %v626, 7
    %v628 = vsub.s32 1, %v627
    %v629 = vrot.slane %v620, %v628
    %v630 = vlaneseq
    %v631 = vshrl.u32 %v630, 7
    %v632 = vsub.s32 2, %v631
    %v633 = vrot.slane %v620, %v632
    %v634 = vlaneseq
    %v635 = vshrl.u32 %v634, 7
    %v636 = vsub.s32 3, %v635
    %v637 = vrot.slane %v620, %v636
    %v674 = vunpack.c.l.b16 %v588
    %v675 = vunpack.c.h.b16 %v588
    %v676 = vunpack.c.l.b16 %v589
    %v677 = vunpack.c.h.b16 %v589
    %v678 = vunpack.c.l.b16 %v590
    %v679 = vunpack.c.h.b16 %v590
    %v680 = vunpack.c.l.b16 %v591
    %v681 = vunpack.c.h.b16 %v591
    %v682 = vunpack.c.l.b16 %v592
    %v683 = vunpack.c.h.b16 %v592
    %v684 = vunpack.c.l.b16 %v593
    %v685 = vunpack.c.h.b16 %v593
    %v686 = vunpack.c.l.b16 %v594
    %v687 = vunpack.c.h.b16 %v594
    %v688 = vunpack.c.l.b16 %v595
    %v689 = vunpack.c.h.b16 %v595
    %v690 = vunpack.c.l.b16 %v596
    %v691 = vunpack.c.h.b16 %v596
    %v692 = vunpack.c.l.b16 %v597
    %v693 = vunpack.c.h.b16 %v597
    %v694 = vunpack.c.l.b16 %v598
    %v695 = vunpack.c.h.b16 %v598
    %v696 = vunpack.c.l.b16 %v599
    %v697 = vunpack.c.h.b16 %v599
    %v698 = vunpack.c.l.b16 %v600
    %v699 = vunpack.c.h.b16 %v600
    %v700 = vunpack.c.l.b16 %v601
    %v701 = vunpack.c.h.b16 %v601
    %v702 = vunpack.c.l.b16 %v602
    %v703 = vunpack.c.h.b16 %v602
    %v704 = vunpack.c.l.b16 %v603
    %v705 = vunpack.c.h.b16 %v603
    %v706 = vunpack.c.l.b16 %v604
    %v707 = vunpack.c.h.b16 %v604
    %v708 = vunpack.c.l.b16 %v605
    %v709 = vunpack.c.h.b16 %v605
    %v710 = vunpack.c.l.b16 %v606
    %v711 = vunpack.c.h.b16 %v606
    %v712 = vunpack.c.l.b16 %v607
    %v713 = vunpack.c.h.b16 %v607
    %v714 = vunpack.c.l.b16 %v608
    %v715 = vunpack.c.h.b16 %v608
    %v716 = vunpack.c.l.b16 %v609
    %v717 = vunpack.c.h.b16 %v609
    %v718 = vunpack.c.l.b16 %v610
    %v719 = vunpack.c.h.b16 %v610
    %v720 = vunpack.c.l.b16 %v611
    %v721 = vunpack.c.h.b16 %v611
    %v722 = vunpack.c.l.b16 %v612
    %v723 = vunpack.c.h.b16 %v612
    %v724 = vunpack.c.l.b16 %v613
    %v725 = vunpack.c.h.b16 %v613
    %v726 = vunpack.c.l.b16 %v614
    %v727 = vunpack.c.h.b16 %v614
    %v728 = vunpack.c.l.b16 %v615
    %v729 = vunpack.c.h.b16 %v615
    %v730 = vunpack.c.l.b16 %v616
    %v731 = vunpack.c.h.b16 %v616
    %v732 = vunpack.c.l.b16 %v617
    %v733 = vunpack.c.h.b16 %v617
    %v734 = vunpack.c.l.b16 %v618
    %v735 = vunpack.c.h.b16 %v618
    %v736 = vunpack.c.l.b16 %v619
    %v737 = vunpack.c.h.b16 %v619
    %v738 = vpack.c.b16 %v678, %v674
    %v739 = vpack.c.b16 %v679, %v675
    %v740 = vpack.c.b16 %v680, %v676
    %v741 = vpack.c.b16 %v681, %v677
    %v742 = vpack.c.b16 %v686, %v682
    %v743 = vpack.c.b16 %v687, %v683
    %v744 = vpack.c.b16 %v688, %v684
    %v745 = vpack.c.b16 %v689, %v685
    %v746 = vpack.c.b16 %v694, %v690
    %v747 = vpack.c.b16 %v695, %v691
    %v748 = vpack.c.b16 %v696, %v692
    %v749 = vpack.c.b16 %v697, %v693
    %v750 = vpack.c.b16 %v702, %v698
    %v751 = vpack.c.b16 %v703, %v699
    %v752 = vpack.c.b16 %v704, %v700
    %v753 = vpack.c.b16 %v705, %v701
    %v754 = vpack.c.b16 %v710, %v706
    %v755 = vpack.c.b16 %v711, %v707
    %v756 = vpack.c.b16 %v712, %v708
    %v757 = vpack.c.b16 %v713, %v709
    %v758 = vpack.c.b16 %v718, %v714
    %v759 = vpack.c.b16 %v719, %v715
    %v760 = vpack.c.b16 %v720, %v716
    %v761 = vpack.c.b16 %v721, %v717
    %v762 = vpack.c.b16 %v726, %v722
    %v763 = vpack.c.b16 %v727, %v723
    %v764 = vpack.c.b16 %v728, %v724
    %v765 = vpack.c.b16 %v729, %v725
    %v766 = vpack.c.b16 %v734, %v730
    %v767 = vpack.c.b16 %v735, %v731
    %v768 = vpack.c.b16 %v736, %v732
    %v769 = vpack.c.b16 %v737, %v733
    %802 = vmatprep.subr.bf16.mxu0 %v739
    %803 = vmatpush1.bf16.msra.mxu0 %v738
    %804 = vmatprep.subr.bf16.mxu0 %v743
    %805 = vmatpush1.bf16.msra.mxu0 %v742
    %806 = vmatprep.subr.bf16.mxu0 %v747
    %807 = vmatpush1.bf16.msra.mxu0 %v746
    %808 = vmatprep.subr.bf16.mxu0 %v751
    %809 = vmatpush1.bf16.msra.mxu0 %v750
    %810 = vmatprep.subr.bf16.mxu0 %v755
    %811 = vmatpush1.bf16.msra.mxu0 %v754
    %812 = vmatprep.subr.bf16.mxu0 %v759
    %813 = vmatpush1.bf16.msra.mxu0 %v758
    %814 = vmatprep.subr.bf16.mxu0 %v763
    %815 = vmatpush1.bf16.msra.mxu0 %v762
    %816 = vmatprep.subr.bf16.mxu0 %v767
    %817 = vmatpush1.bf16.msra.mxu0 %v766
    %818 = vmatprep.subr.bf16.mxu0 0
    %819 = vmatpush1.bf16.msra.mxu0 0
    %820 = vmatprep.subr.bf16.mxu0 0
    %821 = vmatpush1.bf16.msra.mxu0 0
    %822 = vmatprep.subr.bf16.mxu0 0
    %823 = vmatpush1.bf16.msra.mxu0 0
    %824 = vmatprep.subr.bf16.mxu0 0
    %825 = vmatpush1.bf16.msra.mxu0 0
    %826 = vmatprep.subr.bf16.mxu0 0
    %827 = vmatpush1.bf16.msra.mxu0 0
    %828 = vmatprep.subr.bf16.mxu0 0
    %829 = vmatpush1.bf16.msra.mxu0 0
    %830 = vmatprep.subr.bf16.mxu0 0
    %831 = vmatpush1.bf16.msra.mxu0 0
    %832 = vmatprep.subr.bf16.mxu0 0
    %833 = vmatpush1.bf16.msra.mxu0 0
    %834 = vmatprep.mubr.bf16.mxu0 0
    %835 = vmatmul.mubr.bf16.gmra.mrb[0].mxu0 %v587
    %v836 = vpop.f32.mrb[0].mxu0
    %v837 = vadd.f32 %v625, %v836
    %v838 = vpop.f32.mrb[0].mxu0
    %v839 = vadd.f32 %v629, %v838
    %v840 = vpop.f32.mrb[0].mxu0
    %v841 = vadd.f32 %v625, %v840
    %v842 = vpop.f32.mrb[0].mxu0
    %v843 = vadd.f32 %v629, %v842
    %844 = vdwg.mxu0
    %845 = vmatprep.subr.bf16.mxu0 %v741
    %846 = vmatpush1.bf16.msra.mxu0 %v740
    %847 = vmatprep.subr.bf16.mxu0 %v745
    %848 = vmatpush1.bf16.msra.mxu0 %v744
    %849 = vmatprep.subr.bf16.mxu0 %v749
    %850 = vmatpush1.bf16.msra.mxu0 %v748
    %851 = vmatprep.subr.bf16.mxu0 %v753
    %852 = vmatpush1.bf16.msra.mxu0 %v752
    %853 = vmatprep.subr.bf16.mxu0 %v757
    %854 = vmatpush1.bf16.msra.mxu0 %v756
    %855 = vmatprep.subr.bf16.mxu0 %v761
    %856 = vmatpush1.bf16.msra.mxu0 %v760
    %857 = vmatprep.subr.bf16.mxu0 %v765
    %858 = vmatpush1.bf16.msra.mxu0 %v764
    %859 = vmatprep.subr.bf16.mxu0 %v769
    %860 = vmatpush1.bf16.msra.mxu0 %v768
    %861 = vmatprep.subr.bf16.mxu0 0
    %862 = vmatpush1.bf16.msra.mxu0 0
    %863 = vmatprep.subr.bf16.mxu0 0
    %864 = vmatpush1.bf16.msra.mxu0 0
    %865 = vmatprep.subr.bf16.mxu0 0
    %866 = vmatpush1.bf16.msra.mxu0 0
    %867 = vmatprep.subr.bf16.mxu0 0
    %868 = vmatpush1.bf16.msra.mxu0 0
    %869 = vmatprep.subr.bf16.mxu0 0
    %870 = vmatpush1.bf16.msra.mxu0 0
    %871 = vmatprep.subr.bf16.mxu0 0
    %872 = vmatpush1.bf16.msra.mxu0 0
    %873 = vmatprep.subr.bf16.mxu0 0
    %874 = vmatpush1.bf16.msra.mxu0 0
    %875 = vmatprep.subr.bf16.mxu0 0
    %876 = vmatpush1.bf16.msra.mxu0 0
    %877 = vmatprep.mubr.bf16.mxu0 0
    %878 = vmatmul.mubr.bf16.gmra.mrb[0].mxu0 %v587
    %v879 = vpop.f32.mrb[0].mxu0
    %v880 = vadd.f32 %v633, %v879
    %v881 = vpop.f32.mrb[0].mxu0
    %v882 = vadd.f32 %v637, %v881
    %v883 = vpop.f32.mrb[0].mxu0
    %v884 = vadd.f32 %v633, %v883
    %v885 = vpop.f32.mrb[0].mxu0
    %v886 = vadd.f32 %v637, %v885
    %887 = vdwg.mxu0
    %v888 = vmax.f32 %v837, 0.0
    %v889 = vmax.f32 %v839, 0.0
    %v890 = vmax.f32 %v880, 0.0
    %v891 = vmax.f32 %v882, 0.0
    %v892 = vmax.f32 %v841, 0.0
    %v893 = vmax.f32 %v843, 0.0
    %v894 = vmax.f32 %v884, 0.0
    %v895 = vmax.f32 %v886, 0.0
    %v896 = vpack.c.bf16 %v892, %v888
    %v897 = vpack.c.bf16 %v893, %v889
    %v898 = vpack.c.bf16 %v894, %v890
    %v899 = vpack.c.bf16 %v895, %v891
    %v900 = vld [vmem:[%s10] sm:$0xf]
    %v901 = vld [vmem:[%s10 + $0x4] sm:$0xf]
    %v902 = vld [vmem:[%s10 + $0x8] sm:$0xf]
    %v903 = vld [vmem:[%s10 + $0xc] sm:$0xf]
    %v904 = vld [vmem:[%s10 + $0x10] sm:$0xf]
    %v905 = vld [vmem:[%s10 + $0x14] sm:$0xf]
    %v906 = vld [vmem:[%s10 + $0x18] sm:$0xf]
    %v907 = vld [vmem:[%s10 + $0x1c] sm:$0xf]
    %v908 = vld [vmem:[%s10 + $0x20] sm:$0xf]
    %v909 = vld [vmem:[%s10 + $0x24] sm:$0xf]
    %v910 = vld [vmem:[%s10 + $0x28] sm:$0xf]
    %v911 = vld [vmem:[%s10 + $0x2c] sm:$0xf]
    %v912 = vld [vmem:[%s10 + $0x30] sm:$0xf]
    %v913 = vld [vmem:[%s10 + $0x34] sm:$0xf]
    %v914 = vld [vmem:[%s10 + $0x38] sm:$0xf]
    %v915 = vld [vmem:[%s10 + $0x3c] sm:$0xf]
    %v916 = vld [vmem:[%s10 + $0x40] sm:$0xf]
    %v917 = vld [vmem:[%s10 + $0x44] sm:$0xf]
    %v918 = vld [vmem:[%s10 + $0x48] sm:$0xf]
    %v919 = vld [vmem:[%s10 + $0x4c] sm:$0xf]
    %v920 = vld [vmem:[%s10 + $0x50] sm:$0xf]
    %v921 = vld [vmem:[%s10 + $0x54] sm:$0xf]
    %v922 = vld [vmem:[%s10 + $0x58] sm:$0xf]
    %v923 = vld [vmem:[%s10 + $0x5c] sm:$0xf]
    %v924 = vld [vmem:[%s10 + $0x60] sm:$0xf]
    %v925 = vld [vmem:[%s10 + $0x64] sm:$0xf]
    %v926 = vld [vmem:[%s10 + $0x68] sm:$0xf]
    %v927 = vld [vmem:[%s10 + $0x6c] sm:$0xf]
    %v928 = vld [vmem:[%s10 + $0x70] sm:$0xf]
    %v929 = vld [vmem:[%s10 + $0x74] sm:$0xf]
    %v930 = vld [vmem:[%s10 + $0x78] sm:$0xf]
    %v931 = vld [vmem:[%s10 + $0x7c] sm:$0xf]
    %v932 = vld [vmem:[%s10 + $0x80] sm:$0xf]
    %v933 = vld [vmem:[%s10 + $0x84] sm:$0xf]
    %v934 = vld [vmem:[%s10 + $0x88] sm:$0xf]
    %v935 = vld [vmem:[%s10 + $0x8c] sm:$0xf]
    %v936 = vld [vmem:[%s10 + $0x90] sm:$0xf]
    %v937 = vld [vmem:[%s10 + $0x94] sm:$0xf]
    %v938 = vld [vmem:[%s10 + $0x98] sm:$0xf]
    %v939 = vld [vmem:[%s10 + $0x9c] sm:$0xf]
    %v940 = vld [vmem:[%s10 + $0xa0] sm:$0xf]
    %v941 = vld [vmem:[%s10 + $0xa4] sm:$0xf]
    %v942 = vld [vmem:[%s10 + $0xa8] sm:$0xf]
    %v943 = vld [vmem:[%s10 + $0xac] sm:$0xf]
    %v944 = vld [vmem:[%s10 + $0xb0] sm:$0xf]
    %v945 = vld [vmem:[%s10 + $0xb4] sm:$0xf]
    %v946 = vld [vmem:[%s10 + $0xb8] sm:$0xf]
    %v947 = vld [vmem:[%s10 + $0xbc] sm:$0xf]
    %v948 = vld [vmem:[%s10 + $0xc0] sm:$0xf]
    %v949 = vld [vmem:[%s10 + $0xc4] sm:$0xf]
    %v950 = vld [vmem:[%s10 + $0xc8] sm:$0xf]
    %v951 = vld [vmem:[%s10 + $0xcc] sm:$0xf]
    %v952 = vld [vmem:[%s10 + $0xd0] sm:$0xf]
    %v953 = vld [vmem:[%s10 + $0xd4] sm:$0xf]
    %v954 = vld [vmem:[%s10 + $0xd8] sm:$0xf]
    %v955 = vld [vmem:[%s10 + $0xdc] sm:$0xf]
    %v956 = vld [vmem:[%s10 + $0xe0] sm:$0xf]
    %v957 = vld [vmem:[%s10 + $0xe4] sm:$0xf]
    %v958 = vld [vmem:[%s10 + $0xe8] sm:$0xf]
    %v959 = vld [vmem:[%s10 + $0xec] sm:$0xf]
    %v960 = vld [vmem:[%s10 + $0xf0] sm:$0xf]
    %v961 = vld [vmem:[%s10 + $0xf4] sm:$0xf]
    %v962 = vld [vmem:[%s10 + $0xf8] sm:$0xf]
    %v963 = vld [vmem:[%s10 + $0xfc] sm:$0xf]
    %v964 = vld [vmem:[%s11] sm:$0x1]
    %v966 = vlaneseq
    %v967 = vshrl.u32 %v966, 7
    %v968 = vsub.s32 0, %v967
    %v969 = vrot.slane %v964, %v968
    %v1035 = vunpack.c.l.b16 %v900
    %v1036 = vunpack.c.l.b16 %v901
    %v1037 = vunpack.c.l.b16 %v902
    %v1038 = vunpack.c.l.b16 %v903
    %v1039 = vunpack.c.l.b16 %v904
    %v1040 = vunpack.c.l.b16 %v905
    %v1041 = vunpack.c.l.b16 %v906
    %v1042 = vunpack.c.l.b16 %v907
    %v1043 = vunpack.c.l.b16 %v908
    %v1044 = vunpack.c.l.b16 %v909
    %v1045 = vunpack.c.l.b16 %v910
    %v1046 = vunpack.c.l.b16 %v911
    %v1047 = vunpack.c.l.b16 %v912
    %v1048 = vunpack.c.l.b16 %v913
    %v1049 = vunpack.c.l.b16 %v914
    %v1050 = vunpack.c.l.b16 %v915
    %v1051 = vunpack.c.l.b16 %v916
    %v1052 = vunpack.c.l.b16 %v917
    %v1053 = vunpack.c.l.b16 %v918
    %v1054 = vunpack.c.l.b16 %v919
    %v1055 = vunpack.c.l.b16 %v920
    %v1056 = vunpack.c.l.b16 %v921
    %v1057 = vunpack.c.l.b16 %v922
    %v1058 = vunpack.c.l.b16 %v923
    %v1059 = vunpack.c.l.b16 %v924
    %v1060 = vunpack.c.l.b16 %v925
    %v1061 = vunpack.c.l.b16 %v926
    %v1062 = vunpack.c.l.b16 %v927
    %v1063 = vunpack.c.l.b16 %v928
    %v1064 = vunpack.c.l.b16 %v929
    %v1065 = vunpack.c.l.b16 %v930
    %v1066 = vunpack.c.l.b16 %v931
    %v1067 = vunpack.c.l.b16 %v932
    %v1068 = vunpack.c.l.b16 %v933
    %v1069 = vunpack.c.l.b16 %v934
    %v1070 = vunpack.c.l.b16 %v935
    %v1071 = vunpack.c.l.b16 %v936
    %v1072 = vunpack.c.l.b16 %v937
    %v1073 = vunpack.c.l.b16 %v938
    %v1074 = vunpack.c.l.b16 %v939
    %v1075 = vunpack.c.l.b16 %v940
    %v1076 = vunpack.c.l.b16 %v941
    %v1077 = vunpack.c.l.b16 %v942
    %v1078 = vunpack.c.l.b16 %v943
    %v1079 = vunpack.c.l.b16 %v944
    %v1080 = vunpack.c.l.b16 %v945
    %v1081 = vunpack.c.l.b16 %v946
    %v1082 = vunpack.c.l.b16 %v947
    %v1083 = vunpack.c.l.b16 %v948
    %v1084 = vunpack.c.l.b16 %v949
    %v1085 = vunpack.c.l.b16 %v950
    %v1086 = vunpack.c.l.b16 %v951
    %v1087 = vunpack.c.l.b16 %v952
    %v1088 = vunpack.c.l.b16 %v953
    %v1089 = vunpack.c.l.b16 %v954
    %v1090 = vunpack.c.l.b16 %v955
    %v1091 = vunpack.c.l.b16 %v956
    %v1092 = vunpack.c.l.b16 %v957
    %v1093 = vunpack.c.l.b16 %v958
    %v1094 = vunpack.c.l.b16 %v959
    %v1095 = vunpack.c.l.b16 %v960
    %v1096 = vunpack.c.l.b16 %v961
    %v1097 = vunpack.c.l.b16 %v962
    %v1098 = vunpack.c.l.b16 %v963
    %v1099 = vpack.c.b16 %v1036, %v1035
    %v1100 = vpack.c.b16 %v1038, %v1037
    %v1101 = vpack.c.b16 %v1040, %v1039
    %v1102 = vpack.c.b16 %v1042, %v1041
    %v1103 = vpack.c.b16 %v1044, %v1043
    %v1104 = vpack.c.b16 %v1046, %v1045
    %v1105 = vpack.c.b16 %v1048, %v1047
    %v1106 = vpack.c.b16 %v1050, %v1049
    %v1107 = vpack.c.b16 %v1052, %v1051
    %v1108 = vpack.c.b16 %v1054, %v1053
    %v1109 = vpack.c.b16 %v1056, %v1055
    %v1110 = vpack.c.b16 %v1058, %v1057
    %v1111 = vpack.c.b16 %v1060, %v1059
    %v1112 = vpack.c.b16 %v1062, %v1061
    %v1113 = vpack.c.b16 %v1064, %v1063
    %v1114 = vpack.c.b16 %v1066, %v1065
    %v1115 = vpack.c.b16 %v1068, %v1067
    %v1116 = vpack.c.b16 %v1070, %v1069
    %v1117 = vpack.c.b16 %v1072, %v1071
    %v1118 = vpack.c.b16 %v1074, %v1073
    %v1119 = vpack.c.b16 %v1076, %v1075
    %v1120 = vpack.c.b16 %v1078, %v1077
    %v1121 = vpack.c.b16 %v1080, %v1079
    %v1122 = vpack.c.b16 %v1082, %v1081
    %v1123 = vpack.c.b16 %v1084, %v1083
    %v1124 = vpack.c.b16 %v1086, %v1085
    %v1125 = vpack.c.b16 %v1088, %v1087
    %v1126 = vpack.c.b16 %v1090, %v1089
    %v1127 = vpack.c.b16 %v1092, %v1091
    %v1128 = vpack.c.b16 %v1094, %v1093
    %v1129 = vpack.c.b16 %v1096, %v1095
    %v1130 = vpack.c.b16 %v1098, %v1097
    %1163 = vmatprep.subr.bf16.mxu0 0
    %1164 = vmatpush1.bf16.msra.mxu0 %v1099
    %1165 = vmatprep.subr.bf16.mxu0 0
    %1166 = vmatpush1.bf16.msra.mxu0 %v1100
    %1167 = vmatprep.subr.bf16.mxu0 0
    %1168 = vmatpush1.bf16.msra.mxu0 %v1101
    %1169 = vmatprep.subr.bf16.mxu0 0
    %1170 = vmatpush1.bf16.msra.mxu0 %v1102
    %1171 = vmatprep.subr.bf16.mxu0 0
    %1172 = vmatpush1.bf16.msra.mxu0 %v1103
    %1173 = vmatprep.subr.bf16.mxu0 0
    %1174 = vmatpush1.bf16.msra.mxu0 %v1104
    %1175 = vmatprep.subr.bf16.mxu0 0
    %1176 = vmatpush1.bf16.msra.mxu0 %v1105
    %1177 = vmatprep.subr.bf16.mxu0 0
    %1178 = vmatpush1.bf16.msra.mxu0 %v1106
    %1179 = vmatprep.subr.bf16.mxu0 0
    %1180 = vmatpush1.bf16.msra.mxu0 %v1107
    %1181 = vmatprep.subr.bf16.mxu0 0
    %1182 = vmatpush1.bf16.msra.mxu0 %v1108
    %1183 = vmatprep.subr.bf16.mxu0 0
    %1184 = vmatpush1.bf16.msra.mxu0 %v1109
    %1185 = vmatprep.subr.bf16.mxu0 0
    %1186 = vmatpush1.bf16.msra.mxu0 %v1110
    %1187 = vmatprep.subr.bf16.mxu0 0
    %1188 = vmatpush1.bf16.msra.mxu0 %v1111
    %1189 = vmatprep.subr.bf16.mxu0 0
    %1190 = vmatpush1.bf16.msra.mxu0 %v1112
    %1191 = vmatprep.subr.bf16.mxu0 0
    %1192 = vmatpush1.bf16.msra.mxu0 %v1113
    %1193 = vmatprep.subr.bf16.mxu0 0
    %1194 = vmatpush1.bf16.msra.mxu0 %v1114
    %1195 = vmatprep.mubr.bf16.mxu0 %v897
    %1196 = vmatmul.mubr.bf16.gmra.mrb[0].mxu0 %v896
    %v1197 = vpop.f32.mrb[0].mxu0
    %v1198 = vadd.f32 %v969, %v1197
    %v1199 = vpop.f32.mrb[0].mxu0
    %v1200 = vpop.f32.mrb[0].mxu0
    %v1201 = vadd.f32 %v969, %v1200
    %v1202 = vpop.f32.mrb[0].mxu0
    %1203 = vdwg.mxu0
    %1204 = vmatprep.subr.bf16.mxu0 0
    %1205 = vmatpush1.bf16.msra.mxu0 %v1115
    %1206 = vmatprep.subr.bf16.mxu0 0
    %1207 = vmatpush1.bf16.msra.mxu0 %v1116
    %1208 = vmatprep.subr.bf16.mxu0 0
    %1209 = vmatpush1.bf16.msra.mxu0 %v1117
    %1210 = vmatprep.subr.bf16.mxu0 0
    %1211 = vmatpush1.bf16.msra.mxu0 %v1118
    %1212 = vmatprep.subr.bf16.mxu0 0
    %1213 = vmatpush1.bf16.msra.mxu0 %v1119
    %1214 = vmatprep.subr.bf16.mxu0 0
    %1215 = vmatpush1.bf16.msra.mxu0 %v1120
    %1216 = vmatprep.subr.bf16.mxu0 0
    %1217 = vmatpush1.bf16.msra.mxu0 %v1121
    %1218 = vmatprep.subr.bf16.mxu0 0
    %1219 = vmatpush1.bf16.msra.mxu0 %v1122
    %1220 = vmatprep.subr.bf16.mxu0 0
    %1221 = vmatpush1.bf16.msra.mxu0 %v1123
    %1222 = vmatprep.subr.bf16.mxu0 0
    %1223 = vmatpush1.bf16.msra.mxu0 %v1124
    %1224 = vmatprep.subr.bf16.mxu0 0
    %1225 = vmatpush1.bf16.msra.mxu0 %v1125
    %1226 = vmatprep.subr.bf16.mxu0 0
    %1227 = vmatpush1.bf16.msra.mxu0 %v1126
    %1228 = vmatprep.subr.bf16.mxu0 0
    %1229 = vmatpush1.bf16.msra.mxu0 %v1127
    %1230 = vmatprep.subr.bf16.mxu0 0
    %1231 = vmatpush1.bf16.msra.mxu0 %v1128
    %1232 = vmatprep.subr.bf16.mxu0 0
    %1233 = vmatpush1.bf16.msra.mxu0 %v1129
    %1234 = vmatprep.subr.bf16.mxu0 0
    %1235 = vmatpush1.bf16.msra.mxu0 %v1130
    %1236 = vmatprep.mubr.bf16.mxu0 %v899
    %1237 = vmatmul.mubr.bf16.gmra.mrb[0].mxu0 %v898
    %v1238 = vpop.f32.mrb[0].mxu0
    %v1239 = vadd.f32 %v1198, %v1238
    %v1240 = vpop.f32.mrb[0].mxu0
    %v1241 = vpop.f32.mrb[0].mxu0
    %v1242 = vadd.f32 %v1201, %v1241
    %v1243 = vpop.f32.mrb[0].mxu0
    %1244 = vdwg.mxu0
    %v1245 = vadd.f32 %v545, %v1239
    %v1246 = vadd.f32 %v546, %v1242
    %1247 = vst [vmem:[#allocation4] sm:$0xff] %v1245
    %1248 = vst [vmem:[#allocation4 + $0x8] sm:$0xff] %v1246
    // Predicated region
    $region57: #{tpu_custom_call.1} parent=1 // pred_check
      _
    $region58: #{tpu_custom_call.1} parent=1 // pred_check_branch
      %1250 = sbr.rel (0) target = $region60
    $region59: #{tpu_custom_call.1} parent=1 // pred_region
      %s1252 = ssub.s32 256, 256
      %1253 = vsyncadd [#allocation5], %s1252
      %s1254 = sshll.u32 [#allocation4], 4
      %s1255 = int_to_ptr.vmem [resolvable:$true] %s1254
      %1260 = dma.vmem_to_hbm [thread:$0]  %s1255, 256, %s12, [#allocation5], 128, 128, 8
    $region60: #{tpu_custom_call.1} parent=1 // pred_fallthru
      _
    // Predicated region
    $region61: #{tpu_custom_call.1} parent=1 // pred_check
      _
    $region62: #{tpu_custom_call.1} parent=1 // pred_check_branch
      %1262 = sbr.rel (0) target = $region64
    $region63: #{tpu_custom_call.1} parent=1 // pred_region
      %1263 = dma.done [#allocation5], 256
    $region64: #{tpu_custom_call.1} parent=1 // pred_fallthru
      _
    %1264 = vsyncpa [#allocation5], 1

</llo_original>
